<compile_context>
chip_gen: v5e
topology: v5e:2x2
jax: 0.10.0
libtpu: 0.0.40
codegen_flags: <defaults>
</compile_context>

<pallas_src>
import jax
import jax.numpy as jnp
from jax.experimental import pallas as pl
from jax.experimental.pallas import tpu as pltpu


def _ensemble_kernel(x_ref, w_ref, b_ref, o_ref):
    """One fused ensemble step.

    Grid: (i, k) = (batch tile, D/K tile); axis 1 is the reduction axis.

    x_ref: (tb, tk)      batch tile of flattened input
    w_ref: (M, tk, NC)   all M members' weight slices for this K tile
    b_ref: (M, NC)       all M biases (tiny, re-fetched per step; negligible)
    o_ref: (tb, NC) f32  resident accumulator / output
    """
    k = pl.program_id(1)
    nk = pl.num_programs(1)
    n_models = w_ref.shape[0]
    inv_m = 1.0 / n_models

    # Member mean on the VPU (reduction over the slow leading axis = plain
    # vreg adds); keep the mean in f32 for accuracy, cast to the x dtype so
    # the MXU sees matching operand dtypes (fast bf16 path if x is bf16).
    w_bar = (jnp.sum(w_ref[...].astype(jnp.float32), axis=0) * inv_m).astype(
        x_ref.dtype
    )
    partial = jnp.dot(x_ref[...], w_bar, preferred_element_type=jnp.float32)

    @pl.when(k == 0)
    def _():
        o_ref[...] = partial          # first K step: store (skip zero-init RMW)

    @pl.when(k != 0)
    def _():
        o_ref[...] += partial         # later K steps: accumulate in place

    @pl.when(k == nk - 1)
    def _():
        # Mean bias added exactly once per batch tile.
        b_bar = (
            jnp.sum(b_ref[...].astype(jnp.float32), axis=0, keepdims=True) * inv_m
        )
        o_ref[...] += b_bar


def _pick_tile(total, cap, mult):
    """Largest multiple of `mult` that divides `total` and is <= cap; else `total`."""
    t = (min(cap, total) // mult) * mult
    while t >= mult:
        if total % t == 0:
            return t
        t -= mult
    return total


def ensemble_forward(x_nchw, weights, biases, *, tb_cap=128, tk_cap=2048):
    """x_nchw: [B, C, H, W]; weights: [M, D, NC]; biases: [M, NC].

    Returns {'logits': [B, NC]} (f32), averaged over the M ensemble members.
    Matches: torch.stack([model(x)['logits'] for model in models]).mean(0).
    """
    B = x_nchw.shape[0]
    M, D, NC = weights.shape

    x_flat = x_nchw.reshape(B, D)  # glue: flatten NCHW -> [B, D] (lane-major)

    # K tile: multiple of 128 dividing D, capped so the double-buffered weight
    # block (M * tk * max(NC,128)-lane-padded * itemsize * 2) stays well under
    # the scoped VMEM limit on v5e/v6e/v7x.  Batch tile: multiple of 8 (or the
    # full B).  Falling back to the full extent keeps the (8,128) BlockSpec
    # rule satisfied for small/odd shapes.
    lane_nc = max(NC, 128)
    bytes_per_tk = 2 * M * lane_nc * jnp.dtype(weights.dtype).itemsize
    vmem_budget = 16 * 1024 * 1024
    tk_cap = min(tk_cap, max(128, vmem_budget // max(bytes_per_tk, 1)))
    tk = _pick_tile(D, tk_cap, 128)
    tb = _pick_tile(B, tb_cap, 8)
    grid = (B // tb, D // tk)

    out = pl.pallas_call(
        _ensemble_kernel,
        out_shape=jax.ShapeDtypeStruct((B, NC), jnp.float32),
        grid_spec=pltpu.PrefetchScalarGridSpec(
            num_scalar_prefetch=0,
            grid=grid,
            in_specs=[
                pl.BlockSpec((tb, tk), lambda i, k: (i, k)),        # x tile
                pl.BlockSpec((M, tk, NC), lambda i, k: (0, k, 0)),  # all W, K tile
                pl.BlockSpec((M, NC), lambda i, k: (0, 0)),         # all biases
            ],
            out_specs=pl.BlockSpec((tb, NC), lambda i, k: (i, 0)),  # resident acc
        ),
        compiler_params=pltpu.CompilerParams(
            # batch axis parallel (megacore / v7x 2-TC), D axis is the reduction
            dimension_semantics=("parallel", "arbitrary"),
        ),
    )(x_flat, weights, biases)
    # NOTE: NC (=16) < 128 lanes -> masked partial output stores, but the
    # output is only B*NC f32; padding NC to 128 would multiply weight HBM
    # traffic 8x, so we deliberately keep the narrow logits dim.
    return {"logits": out}


def _reference(x_nchw, weights, biases):
    B = x_nchw.shape[0]
    M, D, NC = weights.shape
    x_flat = x_nchw.reshape(B, D)
    outs = jnp.stack([x_flat @ weights[m] + biases[m] for m in range(M)])
    return outs.mean(0)


if __name__ == "__main__":
    # Small shapes consistent with the module: NCHW input, M ensemble members,
    # each a flatten+Linear classifier producing NC logits.
    B, C, H, W = 2, 4, 16, 16
    M = 4                 # number of ensemble members
    NC = 16               # number of classes (logits dim)
    D = C * H * W         # 1024

    key = jax.random.PRNGKey(0)
    kx, kw, kb = jax.random.split(key, 3)

    x = jax.random.normal(kx, (B, C, H, W), dtype=jnp.float32)
    # Deterministic synthetic parameters (Linear-like scale 1/sqrt(D)).
    weights = jax.random.normal(kw, (M, D, NC), dtype=jnp.float32) / jnp.sqrt(D)
    biases = jax.random.normal(kb, (M, NC), dtype=jnp.float32) * 0.01

    out = ensemble_forward(x, weights, biases)
    logits = jax.block_until_ready(out["logits"])

    ref = _reference(x, weights, biases)
    assert logits.shape == (B, NC)
    assert jnp.allclose(logits, ref.astype(logits.dtype), atol=1e-4, rtol=1e-4), (
        "mismatch vs reference"
    )

    print("KERNEL_OK")
</pallas_src>

<mosaic_0001>
module attributes {stable_mosaic.version = 11 : i64} {
  func.func @_ensemble_kernel(%arg0: i32, %arg1: i32, %arg2: memref<2x1024xf32, #tpu.memory_space<vmem>>, %arg3: memref<4x1024x16xf32, #tpu.memory_space<vmem>>, %arg4: memref<4x16xf32, #tpu.memory_space<vmem>>, %arg5: memref<2x16xf32, #tpu.memory_space<vmem>>) attributes {dimension_semantics = [#tpu.dimension_semantics<parallel>, #tpu.dimension_semantics<arbitrary>], iteration_bounds = array<i64: 1, 1>, scalar_prefetch = 0 : i64, scratch_operands = 0 : i64, tpu.core_type = #tpu.core_type<tc>, window_params = [{transform_indices = @transform_0, window_bounds = array<i64: 2, 1024>}, {transform_indices = @transform_1, window_bounds = array<i64: 4, 1024, 16>}, {pipeline_mode = #tpu.pipeline_mode<synchronous>, transform_indices = @transform_2, window_bounds = array<i64: 4, 16>}, {transform_indices = @transform_3, window_bounds = array<i64: 2, 16>}]} {
    %c0 = arith.constant 0 : index
    %c0_0 = arith.constant 0 : index
    %c0_1 = arith.constant 0 : index
    %0 = vector.load %arg3[%c0, %c0_0, %c0_1] : memref<4x1024x16xf32, #tpu.memory_space<vmem>>, vector<4x1024x16xf32>
    %cst = arith.constant dense<0.000000e+00> : vector<1024x16xf32>
    %1 = vector.multi_reduction <add>, %0, %cst [0] : vector<4x1024x16xf32> to vector<1024x16xf32>
    %cst_2 = arith.constant 2.500000e-01 : f32
    %2 = vector.broadcast %cst_2 : f32 to vector<1024x16xf32>
    %3 = arith.mulf %1, %2 : vector<1024x16xf32>
    %c0_3 = arith.constant 0 : index
    %c0_4 = arith.constant 0 : index
    %4 = vector.load %arg2[%c0_3, %c0_4] : memref<2x1024xf32, #tpu.memory_space<vmem>>, vector<2x1024xf32>
    %cst_5 = arith.constant dense<0.000000e+00> : vector<2x16xf32>
    %5 = tpu.matmul %4, %3, %cst_5 {dimension_numbers = #tpu.dot_dimension_numbers<[1], [0], [0], [1], [0, 0, 1, 1], [], []>} : vector<2x1024xf32>, vector<1024x16xf32>, vector<2x16xf32> -> vector<2x16xf32>
    %c0_i32 = arith.constant 0 : i32
    %6 = arith.cmpi eq, %arg1, %c0_i32 : i32
    %7 = arith.extui %6 : i1 to i32
    %c0_i32_6 = arith.constant 0 : i32
    %8 = arith.cmpi ne, %7, %c0_i32_6 : i32
    scf.if %8 {
      %c0_11 = arith.constant 0 : index
      %c0_12 = arith.constant 0 : index
      %15 = vector.load %arg5[%c0_11, %c0_12] : memref<2x16xf32, #tpu.memory_space<vmem>>, vector<2x16xf32>
      tpu.vector_store %arg5[%c0_11, %c0_12], %5 {strides = array<i32>} : memref<2x16xf32, #tpu.memory_space<vmem>>, vector<2x16xf32>,
    } else {
    }
    %c0_i32_7 = arith.constant 0 : i32
    %9 = arith.cmpi ne, %arg1, %c0_i32_7 : i32
    %10 = arith.extui %9 : i1 to i32
    %c0_i32_8 = arith.constant 0 : i32
    %11 = arith.cmpi ne, %10, %c0_i32_8 : i32
    scf.if %11 {
      %c0_11 = arith.constant 0 : index
      %c0_12 = arith.constant 0 : index
      %15 = vector.load %arg5[%c0_11, %c0_12] : memref<2x16xf32, #tpu.memory_space<vmem>>, vector<2x16xf32>
      %16 = arith.addf %15, %5 : vector<2x16xf32>
      %c0_13 = arith.constant 0 : index
      %c0_14 = arith.constant 0 : index
      %17 = vector.load %arg5[%c0_13, %c0_14] : memref<2x16xf32, #tpu.memory_space<vmem>>, vector<2x16xf32>
      tpu.vector_store %arg5[%c0_13, %c0_14], %16 {strides = array<i32>} : memref<2x16xf32, #tpu.memory_space<vmem>>, vector<2x16xf32>,
    } else {
    }
    %c0_i32_9 = arith.constant 0 : i32
    %12 = arith.cmpi eq, %arg1, %c0_i32_9 : i32
    %13 = arith.extui %12 : i1 to i32
    %c0_i32_10 = arith.constant 0 : i32
    %14 = arith.cmpi ne, %13, %c0_i32_10 : i32
    scf.if %14 {
      %c0_11 = arith.constant 0 : index
      %c0_12 = arith.constant 0 : index
      %15 = vector.load %arg4[%c0_11, %c0_12] : memref<4x16xf32, #tpu.memory_space<vmem>>, vector<4x16xf32>
      %cst_13 = arith.constant dense<0.000000e+00> : vector<16xf32>
      %16 = vector.multi_reduction <add>, %15, %cst_13 [0] : vector<4x16xf32> to vector<16xf32>
      %17 = vector.shape_cast %16 : vector<16xf32> to vector<1x16xf32>
      %cst_14 = arith.constant 2.500000e-01 : f32
      %18 = vector.broadcast %cst_14 : f32 to vector<1x16xf32>
      %19 = arith.mulf %17, %18 : vector<1x16xf32>
      %c0_15 = arith.constant 0 : index
      %c0_16 = arith.constant 0 : index
      %20 = vector.load %arg5[%c0_15, %c0_16] : memref<2x16xf32, #tpu.memory_space<vmem>>, vector<2x16xf32>
      %21 = vector.broadcast %19 : vector<1x16xf32> to vector<2x16xf32>
      %22 = arith.addf %20, %21 : vector<2x16xf32>
      %c0_17 = arith.constant 0 : index
      %c0_18 = arith.constant 0 : index
      %23 = vector.load %arg5[%c0_17, %c0_18] : memref<2x16xf32, #tpu.memory_space<vmem>>, vector<2x16xf32>
      tpu.vector_store %arg5[%c0_17, %c0_18], %22 {strides = array<i32>} : memref<2x16xf32, #tpu.memory_space<vmem>>, vector<2x16xf32>,
    } else {
    }
    return
  }
  func.func @transform_0(%arg0: i32, %arg1: i32) -> (i32, i32) {
    %c0_i32 = arith.constant 0 : i32
    return %arg0, %arg1 : i32, i32
  }
  func.func @transform_1(%arg0: i32, %arg1: i32) -> (i32, i32, i32) {
    %c0_i32 = arith.constant 0 : i32
    %c0_i32_0 = arith.constant 0 : i32
    %c0_i32_1 = arith.constant 0 : i32
    return %c0_i32, %arg1, %c0_i32_0 : i32, i32, i32
  }
  func.func @transform_2(%arg0: i32, %arg1: i32) -> (i32, i32) {
    %c0_i32 = arith.constant 0 : i32
    %c0_i32_0 = arith.constant 0 : i32
    %c0_i32_1 = arith.constant 0 : i32
    return %c0_i32, %c0_i32_0 : i32, i32
  }
  func.func @transform_3(%arg0: i32, %arg1: i32) -> (i32, i32) {
    %c0_i32 = arith.constant 0 : i32
    %c0_i32_0 = arith.constant 0 : i32
    return %arg0, %c0_i32 : i32, i32
  }
}

</mosaic_0001>

<llo_original>
// kernel: tpu_custom_call.1
$region0: #{tpu_custom_call.1}
  #allocation0 [shape = 'u32[]', space=smem, size = 0x4, offset = 0x4, fixed_abs, tag = 'smem constant byte address 0x4 - core index']
  #allocation1 [shape = 'u32[72,128]{1,0:T(1,128)}', space=vmem, size = 0x9000, scoped, tag = 'internal scratch']
  %s0 = inlined_call_operand.vmem [shape: f32[2,1024], index: 0, kind: input, shape index: {}]
  %s1 = inlined_call_operand.vmem [shape: f32[4,1024,16], index: 1, kind: input, shape index: {}]
  %s2 = inlined_call_operand.vmem [shape: f32[4,16], index: 2, kind: input, shape index: {}]
  %s3 = inlined_call_operand.hbm [shape: f32[2,16], index: 3, kind: output, shape index: {}]
  %s4 = sld [smem:[#allocation0]]
  $region34: #{tpu_custom_call.1} parent=0
    _
  %s6 = ssub.s32 1, %s4
  %s7 = scalar_select 0, %s6, %s4
  $region1: #{tpu_custom_call.1} parent=0
    #allocation2 [shape = 'u8[1024]{0}', space=vmem, size = 0x400, scoped, tag = 'output window, operand 0, single buffered']
    #allocation3 [shape = 's32[1]{0}', space=sflag, size = 0x4, scoped, tag = 'scoped memory for tpu_custom_call.1']
    %8 = vsyncpa [#allocation3], 0
    // Predicated region
    $region2: #{tpu_custom_call.1} parent=1 // pred_check
      _
    $region3: #{tpu_custom_call.1} parent=1 // pred_check_branch
      %10 = sbr.rel (0) target = $region5
    $region4: #{tpu_custom_call.1} parent=1 // pred_region
      _
    $region5: #{tpu_custom_call.1} parent=1 // pred_fallthru
      _
    // Predicated region
    $region6: #{tpu_custom_call.1} parent=1 // pred_check
      _
    $region7: #{tpu_custom_call.1} parent=1 // pred_check_branch
      %12 = sbr.rel (0) target = $region9
    $region8: #{tpu_custom_call.1} parent=1 // pred_region
      _
    $region9: #{tpu_custom_call.1} parent=1 // pred_fallthru
      _
    // Predicated region
    $region10: #{tpu_custom_call.1} parent=1 // pred_check
      _
    $region11: #{tpu_custom_call.1} parent=1 // pred_check_branch
      %14 = sbr.rel (0) target = $region13
    $region12: #{tpu_custom_call.1} parent=1 // pred_region
      _
    $region13: #{tpu_custom_call.1} parent=1 // pred_fallthru
      _
    %v15 = vld [vmem:[%s1] sm:$0xff]
    %v16 = vld [vmem:[%s1 + $0x8] sm:$0xff]
    %v17 = vld [vmem:[%s1 + $0x10] sm:$0xff]
    %v18 = vld [vmem:[%s1 + $0x18] sm:$0xff]
    %v19 = vld [vmem:[%s1 + $0x20] sm:$0xff]
    %v20 = vld [vmem:[%s1 + $0x28] sm:$0xff]
    %v21 = vld [vmem:[%s1 + $0x30] sm:$0xff]
    %v22 = vld [vmem:[%s1 + $0x38] sm:$0xff]
    %v23 = vld [vmem:[%s1 + $0x40] sm:$0xff]
    %v24 = vld [vmem:[%s1 + $0x48] sm:$0xff]
    %v25 = vld [vmem:[%s1 + $0x50] sm:$0xff]
    %v26 = vld [vmem:[%s1 + $0x58] sm:$0xff]
    %v27 = vld [vmem:[%s1 + $0x60] sm:$0xff]
    %v28 = vld [vmem:[%s1 + $0x68] sm:$0xff]
    %v29 = vld [vmem:[%s1 + $0x70] sm:$0xff]
    %v30 = vld [vmem:[%s1 + $0x78] sm:$0xff]
    %v31 = vld [vmem:[%s1 + $0x80] sm:$0xff]
    %v32 = vld [vmem:[%s1 + $0x88] sm:$0xff]
    %v33 = vld [vmem:[%s1 + $0x90] sm:$0xff]
    %v34 = vld [vmem:[%s1 + $0x98] sm:$0xff]
    %v35 = vld [vmem:[%s1 + $0xa0] sm:$0xff]
    %v36 = vld [vmem:[%s1 + $0xa8] sm:$0xff]
    %v37 = vld [vmem:[%s1 + $0xb0] sm:$0xff]
    %v38 = vld [vmem:[%s1 + $0xb8] sm:$0xff]
    %v39 = vld [vmem:[%s1 + $0xc0] sm:$0xff]
    %v40 = vld [vmem:[%s1 + $0xc8] sm:$0xff]
    %v41 = vld [vmem:[%s1 + $0xd0] sm:$0xff]
    %v42 = vld [vmem:[%s1 + $0xd8] sm:$0xff]
    %v43 = vld [vmem:[%s1 + $0xe0] sm:$0xff]
    %v44 = vld [vmem:[%s1 + $0xe8] sm:$0xff]
    %v45 = vld [vmem:[%s1 + $0xf0] sm:$0xff]
    %v46 = vld [vmem:[%s1 + $0xf8] sm:$0xff]
    %v47 = vld [vmem:[%s1 + $0x100] sm:$0xff]
    %v48 = vld [vmem:[%s1 + $0x108] sm:$0xff]
    %v49 = vld [vmem:[%s1 + $0x110] sm:$0xff]
    %v50 = vld [vmem:[%s1 + $0x118] sm:$0xff]
    %v51 = vld [vmem:[%s1 + $0x120] sm:$0xff]
    %v52 = vld [vmem:[%s1 + $0x128] sm:$0xff]
    %v53 = vld [vmem:[%s1 + $0x130] sm:$0xff]
    %v54 = vld [vmem:[%s1 + $0x138] sm:$0xff]
    %v55 = vld [vmem:[%s1 + $0x140] sm:$0xff]
    %v56 = vld [vmem:[%s1 + $0x148] sm:$0xff]
    %v57 = vld [vmem:[%s1 + $0x150] sm:$0xff]
    %v58 = vld [vmem:[%s1 + $0x158] sm:$0xff]
    %v59 = vld [vmem:[%s1 + $0x160] sm:$0xff]
    %v60 = vld [vmem:[%s1 + $0x168] sm:$0xff]
    %v61 = vld [vmem:[%s1 + $0x170] sm:$0xff]
    %v62 = vld [vmem:[%s1 + $0x178] sm:$0xff]
    %v63 = vld [vmem:[%s1 + $0x180] sm:$0xff]
    %v64 = vld [vmem:[%s1 + $0x188] sm:$0xff]
    %v65 = vld [vmem:[%s1 + $0x190] sm:$0xff]
    %v66 = vld [vmem:[%s1 + $0x198] sm:$0xff]
    %v67 = vld [vmem:[%s1 + $0x1a0] sm:$0xff]
    %v68 = vld [vmem:[%s1 + $0x1a8] sm:$0xff]
    %v69 = vld [vmem:[%s1 + $0x1b0] sm:$0xff]
    %v70 = vld [vmem:[%s1 + $0x1b8] sm:$0xff]
    %v71 = vld [vmem:[%s1 + $0x1c0] sm:$0xff]
    %v72 = vld [vmem:[%s1 + $0x1c8] sm:$0xff]
    %v73 = vld [vmem:[%s1 + $0x1d0] sm:$0xff]
    %v74 = vld [vmem:[%s1 + $0x1d8] sm:$0xff]
    %v75 = vld [vmem:[%s1 + $0x1e0] sm:$0xff]
    %v76 = vld [vmem:[%s1 + $0x1e8] sm:$0xff]
    %v77 = vld [vmem:[%s1 + $0x1f0] sm:$0xff]
    %v78 = vld [vmem:[%s1 + $0x1f8] sm:$0xff]
    %v79 = vld [vmem:[%s1 + $0x200] sm:$0xff]
    %v80 = vld [vmem:[%s1 + $0x208] sm:$0xff]
    %v81 = vld [vmem:[%s1 + $0x210] sm:$0xff]
    %v82 = vld [vmem:[%s1 + $0x218] sm:$0xff]
    %v83 = vld [vmem:[%s1 + $0x220] sm:$0xff]
    %v84 = vld [vmem:[%s1 + $0x228] sm:$0xff]
    %v85 = vld [vmem:[%s1 + $0x230] sm:$0xff]
    %v86 = vld [vmem:[%s1 + $0x238] sm:$0xff]
    %v87 = vld [vmem:[%s1 + $0x240] sm:$0xff]
    %v88 = vld [vmem:[%s1 + $0x248] sm:$0xff]
    %v89 = vld [vmem:[%s1 + $0x250] sm:$0xff]
    %v90 = vld [vmem:[%s1 + $0x258] sm:$0xff]
    %v91 = vld [vmem:[%s1 + $0x260] sm:$0xff]
    %v92 = vld [vmem:[%s1 + $0x268] sm:$0xff]
    %v93 = vld [vmem:[%s1 + $0x270] sm:$0xff]
    %v94 = vld [vmem:[%s1 + $0x278] sm:$0xff]
    %v95 = vld [vmem:[%s1 + $0x280] sm:$0xff]
    %v96 = vld [vmem:[%s1 + $0x288] sm:$0xff]
    %v97 = vld [vmem:[%s1 + $0x290] sm:$0xff]
    %v98 = vld [vmem:[%s1 + $0x298] sm:$0xff]
    %v99 = vld [vmem:[%s1 + $0x2a0] sm:$0xff]
    %v100 = vld [vmem:[%s1 + $0x2a8] sm:$0xff]
    %v101 = vld [vmem:[%s1 + $0x2b0] sm:$0xff]
    %v102 = vld [vmem:[%s1 + $0x2b8] sm:$0xff]
    %v103 = vld [vmem:[%s1 + $0x2c0] sm:$0xff]
    %v104 = vld [vmem:[%s1 + $0x2c8] sm:$0xff]
    %v105 = vld [vmem:[%s1 + $0x2d0] sm:$0xff]
    %v106 = vld [vmem:[%s1 + $0x2d8] sm:$0xff]
    %v107 = vld [vmem:[%s1 + $0x2e0] sm:$0xff]
    %v108 = vld [vmem:[%s1 + $0x2e8] sm:$0xff]
    %v109 = vld [vmem:[%s1 + $0x2f0] sm:$0xff]
    %v110 = vld [vmem:[%s1 + $0x2f8] sm:$0xff]
    %v111 = vld [vmem:[%s1 + $0x300] sm:$0xff]
    %v112 = vld [vmem:[%s1 + $0x308] sm:$0xff]
    %v113 = vld [vmem:[%s1 + $0x310] sm:$0xff]
    %v114 = vld [vmem:[%s1 + $0x318] sm:$0xff]
    %v115 = vld [vmem:[%s1 + $0x320] sm:$0xff]
    %v116 = vld [vmem:[%s1 + $0x328] sm:$0xff]
    %v117 = vld [vmem:[%s1 + $0x330] sm:$0xff]
    %v118 = vld [vmem:[%s1 + $0x338] sm:$0xff]
    %v119 = vld [vmem:[%s1 + $0x340] sm:$0xff]
    %v120 = vld [vmem:[%s1 + $0x348] sm:$0xff]
    %v121 = vld [vmem:[%s1 + $0x350] sm:$0xff]
    %v122 = vld [vmem:[%s1 + $0x358] sm:$0xff]
    %v123 = vld [vmem:[%s1 + $0x360] sm:$0xff]
    %v124 = vld [vmem:[%s1 + $0x368] sm:$0xff]
    %v125 = vld [vmem:[%s1 + $0x370] sm:$0xff]
    %v126 = vld [vmem:[%s1 + $0x378] sm:$0xff]
    %v127 = vld [vmem:[%s1 + $0x380] sm:$0xff]
    %v128 = vld [vmem:[%s1 + $0x388] sm:$0xff]
    %v129 = vld [vmem:[%s1 + $0x390] sm:$0xff]
    %v130 = vld [vmem:[%s1 + $0x398] sm:$0xff]
    %v131 = vld [vmem:[%s1 + $0x3a0] sm:$0xff]
    %v132 = vld [vmem:[%s1 + $0x3a8] sm:$0xff]
    %v133 = vld [vmem:[%s1 + $0x3b0] sm:$0xff]
    %v134 = vld [vmem:[%s1 + $0x3b8] sm:$0xff]
    %v135 = vld [vmem:[%s1 + $0x3c0] sm:$0xff]
    %v136 = vld [vmem:[%s1 + $0x3c8] sm:$0xff]
    %v137 = vld [vmem:[%s1 + $0x3d0] sm:$0xff]
    %v138 = vld [vmem:[%s1 + $0x3d8] sm:$0xff]
    %v139 = vld [vmem:[%s1 + $0x3e0] sm:$0xff]
    %v140 = vld [vmem:[%s1 + $0x3e8] sm:$0xff]
    %v141 = vld [vmem:[%s1 + $0x3f0] sm:$0xff]
    %v142 = vld [vmem:[%s1 + $0x3f8] sm:$0xff]
    %v143 = vld [vmem:[%s1 + $0x400] sm:$0xff]
    %v144 = vld [vmem:[%s1 + $0x408] sm:$0xff]
    %v145 = vld [vmem:[%s1 + $0x410] sm:$0xff]
    %v146 = vld [vmem:[%s1 + $0x418] sm:$0xff]
    %v147 = vld [vmem:[%s1 + $0x420] sm:$0xff]
    %v148 = vld [vmem:[%s1 + $0x428] sm:$0xff]
    %v149 = vld [vmem:[%s1 + $0x430] sm:$0xff]
    %v150 = vld [vmem:[%s1 + $0x438] sm:$0xff]
    %v151 = vld [vmem:[%s1 + $0x440] sm:$0xff]
    %v152 = vld [vmem:[%s1 + $0x448] sm:$0xff]
    %v153 = vld [vmem:[%s1 + $0x450] sm:$0xff]
    %v154 = vld [vmem:[%s1 + $0x458] sm:$0xff]
    %v155 = vld [vmem:[%s1 + $0x460] sm:$0xff]
    %v156 = vld [vmem:[%s1 + $0x468] sm:$0xff]
    %v157 = vld [vmem:[%s1 + $0x470] sm:$0xff]
    %v158 = vld [vmem:[%s1 + $0x478] sm:$0xff]
    %v159 = vld [vmem:[%s1 + $0x480] sm:$0xff]
    %v160 = vld [vmem:[%s1 + $0x488] sm:$0xff]
    %v161 = vld [vmem:[%s1 + $0x490] sm:$0xff]
    %v162 = vld [vmem:[%s1 + $0x498] sm:$0xff]
    %v163 = vld [vmem:[%s1 + $0x4a0] sm:$0xff]
    %v164 = vld [vmem:[%s1 + $0x4a8] sm:$0xff]
    %v165 = vld [vmem:[%s1 + $0x4b0] sm:$0xff]
    %v166 = vld [vmem:[%s1 + $0x4b8] sm:$0xff]
    %v167 = vld [vmem:[%s1 + $0x4c0] sm:$0xff]
    %v168 = vld [vmem:[%s1 + $0x4c8] sm:$0xff]
    %v169 = vld [vmem:[%s1 + $0x4d0] sm:$0xff]
    %v170 = vld [vmem:[%s1 + $0x4d8] sm:$0xff]
    %v171 = vld [vmem:[%s1 + $0x4e0] sm:$0xff]
    %v172 = vld [vmem:[%s1 + $0x4e8] sm:$0xff]
    %v173 = vld [vmem:[%s1 + $0x4f0] sm:$0xff]
    %v174 = vld [vmem:[%s1 + $0x4f8] sm:$0xff]
    %v175 = vld [vmem:[%s1 + $0x500] sm:$0xff]
    %v176 = vld [vmem:[%s1 + $0x508] sm:$0xff]
    %v177 = vld [vmem:[%s1 + $0x510] sm:$0xff]
    %v178 = vld [vmem:[%s1 + $0x518] sm:$0xff]
    %v179 = vld [vmem:[%s1 + $0x520] sm:$0xff]
    %v180 = vld [vmem:[%s1 + $0x528] sm:$0xff]
    %v181 = vld [vmem:[%s1 + $0x530] sm:$0xff]
    %v182 = vld [vmem:[%s1 + $0x538] sm:$0xff]
    %v183 = vld [vmem:[%s1 + $0x540] sm:$0xff]
    %v184 = vld [vmem:[%s1 + $0x548] sm:$0xff]
    %v185 = vld [vmem:[%s1 + $0x550] sm:$0xff]
    %v186 = vld [vmem:[%s1 + $0x558] sm:$0xff]
    %v187 = vld [vmem:[%s1 + $0x560] sm:$0xff]
    %v188 = vld [vmem:[%s1 + $0x568] sm:$0xff]
    %v189 = vld [vmem:[%s1 + $0x570] sm:$0xff]
    %v190 = vld [vmem:[%s1 + $0x578] sm:$0xff]
    %v191 = vld [vmem:[%s1 + $0x580] sm:$0xff]
    %v192 = vld [vmem:[%s1 + $0x588] sm:$0xff]
    %v193 = vld [vmem:[%s1 + $0x590] sm:$0xff]
    %v194 = vld [vmem:[%s1 + $0x598] sm:$0xff]
    %v195 = vld [vmem:[%s1 + $0x5a0] sm:$0xff]
    %v196 = vld [vmem:[%s1 + $0x5a8] sm:$0xff]
    %v197 = vld [vmem:[%s1 + $0x5b0] sm:$0xff]
    %v198 = vld [vmem:[%s1 + $0x5b8] sm:$0xff]
    %v199 = vld [vmem:[%s1 + $0x5c0] sm:$0xff]
    %v200 = vld [vmem:[%s1 + $0x5c8] sm:$0xff]
    %v201 = vld [vmem:[%s1 + $0x5d0] sm:$0xff]
    %v202 = vld [vmem:[%s1 + $0x5d8] sm:$0xff]
    %v203 = vld [vmem:[%s1 + $0x5e0] sm:$0xff]
    %v204 = vld [vmem:[%s1 + $0x5e8] sm:$0xff]
    %v205 = vld [vmem:[%s1 + $0x5f0] sm:$0xff]
    %v206 = vld [vmem:[%s1 + $0x5f8] sm:$0xff]
    %v207 = vld [vmem:[%s1 + $0x600] sm:$0xff]
    %v208 = vld [vmem:[%s1 + $0x608] sm:$0xff]
    %v209 = vld [vmem:[%s1 + $0x610] sm:$0xff]
    %v210 = vld [vmem:[%s1 + $0x618] sm:$0xff]
    %v211 = vld [vmem:[%s1 + $0x620] sm:$0xff]
    %v212 = vld [vmem:[%s1 + $0x628] sm:$0xff]
    %v213 = vld [vmem:[%s1 + $0x630] sm:$0xff]
    %v214 = vld [vmem:[%s1 + $0x638] sm:$0xff]
    %v215 = vld [vmem:[%s1 + $0x640] sm:$0xff]
    %v216 = vld [vmem:[%s1 + $0x648] sm:$0xff]
    %v217 = vld [vmem:[%s1 + $0x650] sm:$0xff]
    %v218 = vld [vmem:[%s1 + $0x658] sm:$0xff]
    %v219 = vld [vmem:[%s1 + $0x660] sm:$0xff]
    %v220 = vld [vmem:[%s1 + $0x668] sm:$0xff]
    %v221 = vld [vmem:[%s1 + $0x670] sm:$0xff]
    %v222 = vld [vmem:[%s1 + $0x678] sm:$0xff]
    %v223 = vld [vmem:[%s1 + $0x680] sm:$0xff]
    %v224 = vld [vmem:[%s1 + $0x688] sm:$0xff]
    %v225 = vld [vmem:[%s1 + $0x690] sm:$0xff]
    %v226 = vld [vmem:[%s1 + $0x698] sm:$0xff]
    %v227 = vld [vmem:[%s1 + $0x6a0] sm:$0xff]
    %v228 = vld [vmem:[%s1 + $0x6a8] sm:$0xff]
    %v229 = vld [vmem:[%s1 + $0x6b0] sm:$0xff]
    %v230 = vld [vmem:[%s1 + $0x6b8] sm:$0xff]
    %v231 = vld [vmem:[%s1 + $0x6c0] sm:$0xff]
    %v232 = vld [vmem:[%s1 + $0x6c8] sm:$0xff]
    %v233 = vld [vmem:[%s1 + $0x6d0] sm:$0xff]
    %v234 = vld [vmem:[%s1 + $0x6d8] sm:$0xff]
    %v235 = vld [vmem:[%s1 + $0x6e0] sm:$0xff]
    %v236 = vld [vmem:[%s1 + $0x6e8] sm:$0xff]
    %v237 = vld [vmem:[%s1 + $0x6f0] sm:$0xff]
    %v238 = vld [vmem:[%s1 + $0x6f8] sm:$0xff]
    %v239 = vld [vmem:[%s1 + $0x700] sm:$0xff]
    %v240 = vld [vmem:[%s1 + $0x708] sm:$0xff]
    %v241 = vld [vmem:[%s1 + $0x710] sm:$0xff]
    %v242 = vld [vmem:[%s1 + $0x718] sm:$0xff]
    %v243 = vld [vmem:[%s1 + $0x720] sm:$0xff]
    %v244 = vld [vmem:[%s1 + $0x728] sm:$0xff]
    %v245 = vld [vmem:[%s1 + $0x730] sm:$0xff]
    %v246 = vld [vmem:[%s1 + $0x738] sm:$0xff]
    %v247 = vld [vmem:[%s1 + $0x740] sm:$0xff]
    %v248 = vld [vmem:[%s1 + $0x748] sm:$0xff]
    %v249 = vld [vmem:[%s1 + $0x750] sm:$0xff]
    %v250 = vld [vmem:[%s1 + $0x758] sm:$0xff]
    %v251 = vld [vmem:[%s1 + $0x760] sm:$0xff]
    %v252 = vld [vmem:[%s1 + $0x768] sm:$0xff]
    %v253 = vld [vmem:[%s1 + $0x770] sm:$0xff]
    %v254 = vld [vmem:[%s1 + $0x778] sm:$0xff]
    %v255 = vld [vmem:[%s1 + $0x780] sm:$0xff]
    %v256 = vld [vmem:[%s1 + $0x788] sm:$0xff]
    %v257 = vld [vmem:[%s1 + $0x790] sm:$0xff]
    %v258 = vld [vmem:[%s1 + $0x798] sm:$0xff]
    %v259 = vld [vmem:[%s1 + $0x7a0] sm:$0xff]
    %v260 = vld [vmem:[%s1 + $0x7a8] sm:$0xff]
    %v261 = vld [vmem:[%s1 + $0x7b0] sm:$0xff]
    %v262 = vld [vmem:[%s1 + $0x7b8] sm:$0xff]
    %v263 = vld [vmem:[%s1 + $0x7c0] sm:$0xff]
    %v264 = vld [vmem:[%s1 + $0x7c8] sm:$0xff]
    %v265 = vld [vmem:[%s1 + $0x7d0] sm:$0xff]
    %v266 = vld [vmem:[%s1 + $0x7d8] sm:$0xff]
    %v267 = vld [vmem:[%s1 + $0x7e0] sm:$0xff]
    %v268 = vld [vmem:[%s1 + $0x7e8] sm:$0xff]
    %v269 = vld [vmem:[%s1 + $0x7f0] sm:$0xff]
    %v270 = vld [vmem:[%s1 + $0x7f8] sm:$0xff]
    %v271 = vld [vmem:[%s1 + $0x800] sm:$0xff]
    %v272 = vld [vmem:[%s1 + $0x808] sm:$0xff]
    %v273 = vld [vmem:[%s1 + $0x810] sm:$0xff]
    %v274 = vld [vmem:[%s1 + $0x818] sm:$0xff]
    %v275 = vld [vmem:[%s1 + $0x820] sm:$0xff]
    %v276 = vld [vmem:[%s1 + $0x828] sm:$0xff]
    %v277 = vld [vmem:[%s1 + $0x830] sm:$0xff]
    %v278 = vld [vmem:[%s1 + $0x838] sm:$0xff]
    %v279 = vld [vmem:[%s1 + $0x840] sm:$0xff]
    %v280 = vld [vmem:[%s1 + $0x848] sm:$0xff]
    %v281 = vld [vmem:[%s1 + $0x850] sm:$0xff]
    %v282 = vld [vmem:[%s1 + $0x858] sm:$0xff]
    %v283 = vld [vmem:[%s1 + $0x860] sm:$0xff]
    %v284 = vld [vmem:[%s1 + $0x868] sm:$0xff]
    %v285 = vld [vmem:[%s1 + $0x870] sm:$0xff]
    %v286 = vld [vmem:[%s1 + $0x878] sm:$0xff]
    %v287 = vld [vmem:[%s1 + $0x880] sm:$0xff]
    %v288 = vld [vmem:[%s1 + $0x888] sm:$0xff]
    %v289 = vld [vmem:[%s1 + $0x890] sm:$0xff]
    %v290 = vld [vmem:[%s1 + $0x898] sm:$0xff]
    %v291 = vld [vmem:[%s1 + $0x8a0] sm:$0xff]
    %v292 = vld [vmem:[%s1 + $0x8a8] sm:$0xff]
    %v293 = vld [vmem:[%s1 + $0x8b0] sm:$0xff]
    %v294 = vld [vmem:[%s1 + $0x8b8] sm:$0xff]
    %v295 = vld [vmem:[%s1 + $0x8c0] sm:$0xff]
    %v296 = vld [vmem:[%s1 + $0x8c8] sm:$0xff]
    %v297 = vld [vmem:[%s1 + $0x8d0] sm:$0xff]
    %v298 = vld [vmem:[%s1 + $0x8d8] sm:$0xff]
    %v299 = vld [vmem:[%s1 + $0x8e0] sm:$0xff]
    %v300 = vld [vmem:[%s1 + $0x8e8] sm:$0xff]
    %v301 = vld [vmem:[%s1 + $0x8f0] sm:$0xff]
    %v302 = vld [vmem:[%s1 + $0x8f8] sm:$0xff]
    %v303 = vld [vmem:[%s1 + $0x900] sm:$0xff]
    %v304 = vld [vmem:[%s1 + $0x908] sm:$0xff]
    %v305 = vld [vmem:[%s1 + $0x910] sm:$0xff]
    %v306 = vld [vmem:[%s1 + $0x918] sm:$0xff]
    %v307 = vld [vmem:[%s1 + $0x920] sm:$0xff]
    %v308 = vld [vmem:[%s1 + $0x928] sm:$0xff]
    %v309 = vld [vmem:[%s1 + $0x930] sm:$0xff]
    %v310 = vld [vmem:[%s1 + $0x938] sm:$0xff]
    %v311 = vld [vmem:[%s1 + $0x940] sm:$0xff]
    %v312 = vld [vmem:[%s1 + $0x948] sm:$0xff]
    %v313 = vld [vmem:[%s1 + $0x950] sm:$0xff]
    %v314 = vld [vmem:[%s1 + $0x958] sm:$0xff]
    %v315 = vld [vmem:[%s1 + $0x960] sm:$0xff]
    %v316 = vld [vmem:[%s1 + $0x968] sm:$0xff]
    %v317 = vld [vmem:[%s1 + $0x970] sm:$0xff]
    %v318 = vld [vmem:[%s1 + $0x978] sm:$0xff]
    %v319 = vld [vmem:[%s1 + $0x980] sm:$0xff]
    %v320 = vld [vmem:[%s1 + $0x988] sm:$0xff]
    %v321 = vld [vmem:[%s1 + $0x990] sm:$0xff]
    %v322 = vld [vmem:[%s1 + $0x998] sm:$0xff]
    %v323 = vld [vmem:[%s1 + $0x9a0] sm:$0xff]
    %v324 = vld [vmem:[%s1 + $0x9a8] sm:$0xff]
    %v325 = vld [vmem:[%s1 + $0x9b0] sm:$0xff]
    %v326 = vld [vmem:[%s1 + $0x9b8] sm:$0xff]
    %v327 = vld [vmem:[%s1 + $0x9c0] sm:$0xff]
    %v328 = vld [vmem:[%s1 + $0x9c8] sm:$0xff]
    %v329 = vld [vmem:[%s1 + $0x9d0] sm:$0xff]
    %v330 = vld [vmem:[%s1 + $0x9d8] sm:$0xff]
    %v331 = vld [vmem:[%s1 + $0x9e0] sm:$0xff]
    %v332 = vld [vmem:[%s1 + $0x9e8] sm:$0xff]
    %v333 = vld [vmem:[%s1 + $0x9f0] sm:$0xff]
    %v334 = vld [vmem:[%s1 + $0x9f8] sm:$0xff]
    %v335 = vld [vmem:[%s1 + $0xa00] sm:$0xff]
    %v336 = vld [vmem:[%s1 + $0xa08] sm:$0xff]
    %v337 = vld [vmem:[%s1 + $0xa10] sm:$0xff]
    %v338 = vld [vmem:[%s1 + $0xa18] sm:$0xff]
    %v339 = vld [vmem:[%s1 + $0xa20] sm:$0xff]
    %v340 = vld [vmem:[%s1 + $0xa28] sm:$0xff]
    %v341 = vld [vmem:[%s1 + $0xa30] sm:$0xff]
    %v342 = vld [vmem:[%s1 + $0xa38] sm:$0xff]
    %v343 = vld [vmem:[%s1 + $0xa40] sm:$0xff]
    %v344 = vld [vmem:[%s1 + $0xa48] sm:$0xff]
    %v345 = vld [vmem:[%s1 + $0xa50] sm:$0xff]
    %v346 = vld [vmem:[%s1 + $0xa58] sm:$0xff]
    %v347 = vld [vmem:[%s1 + $0xa60] sm:$0xff]
    %v348 = vld [vmem:[%s1 + $0xa68] sm:$0xff]
    %v349 = vld [vmem:[%s1 + $0xa70] sm:$0xff]
    %v350 = vld [vmem:[%s1 + $0xa78] sm:$0xff]
    %v351 = vld [vmem:[%s1 + $0xa80] sm:$0xff]
    %v352 = vld [vmem:[%s1 + $0xa88] sm:$0xff]
    %v353 = vld [vmem:[%s1 + $0xa90] sm:$0xff]
    %v354 = vld [vmem:[%s1 + $0xa98] sm:$0xff]
    %v355 = vld [vmem:[%s1 + $0xaa0] sm:$0xff]
    %v356 = vld [vmem:[%s1 + $0xaa8] sm:$0xff]
    %v357 = vld [vmem:[%s1 + $0xab0] sm:$0xff]
    %v358 = vld [vmem:[%s1 + $0xab8] sm:$0xff]
    %v359 = vld [vmem:[%s1 + $0xac0] sm:$0xff]
    %v360 = vld [vmem:[%s1 + $0xac8] sm:$0xff]
    %v361 = vld [vmem:[%s1 + $0xad0] sm:$0xff]
    %v362 = vld [vmem:[%s1 + $0xad8] sm:$0xff]
    %v363 = vld [vmem:[%s1 + $0xae0] sm:$0xff]
    %v364 = vld [vmem:[%s1 + $0xae8] sm:$0xff]
    %v365 = vld [vmem:[%s1 + $0xaf0] sm:$0xff]
    %v366 = vld [vmem:[%s1 + $0xaf8] sm:$0xff]
    %v367 = vld [vmem:[%s1 + $0xb00] sm:$0xff]
    %v368 = vld [vmem:[%s1 + $0xb08] sm:$0xff]
    %v369 = vld [vmem:[%s1 + $0xb10] sm:$0xff]
    %v370 = vld [vmem:[%s1 + $0xb18] sm:$0xff]
    %v371 = vld [vmem:[%s1 + $0xb20] sm:$0xff]
    %v372 = vld [vmem:[%s1 + $0xb28] sm:$0xff]
    %v373 = vld [vmem:[%s1 + $0xb30] sm:$0xff]
    %v374 = vld [vmem:[%s1 + $0xb38] sm:$0xff]
    %v375 = vld [vmem:[%s1 + $0xb40] sm:$0xff]
    %v376 = vld [vmem:[%s1 + $0xb48] sm:$0xff]
    %v377 = vld [vmem:[%s1 + $0xb50] sm:$0xff]
    %v378 = vld [vmem:[%s1 + $0xb58] sm:$0xff]
    %v379 = vld [vmem:[%s1 + $0xb60] sm:$0xff]
    %v380 = vld [vmem:[%s1 + $0xb68] sm:$0xff]
    %v381 = vld [vmem:[%s1 + $0xb70] sm:$0xff]
    %v382 = vld [vmem:[%s1 + $0xb78] sm:$0xff]
    %v383 = vld [vmem:[%s1 + $0xb80] sm:$0xff]
    %v384 = vld [vmem:[%s1 + $0xb88] sm:$0xff]
    %v385 = vld [vmem:[%s1 + $0xb90] sm:$0xff]
    %v386 = vld [vmem:[%s1 + $0xb98] sm:$0xff]
    %v387 = vld [vmem:[%s1 + $0xba0] sm:$0xff]
    %v388 = vld [vmem:[%s1 + $0xba8] sm:$0xff]
    %v389 = vld [vmem:[%s1 + $0xbb0] sm:$0xff]
    %v390 = vld [vmem:[%s1 + $0xbb8] sm:$0xff]
    %v391 = vld [vmem:[%s1 + $0xbc0] sm:$0xff]
    %v392 = vld [vmem:[%s1 + $0xbc8] sm:$0xff]
    %v393 = vld [vmem:[%s1 + $0xbd0] sm:$0xff]
    %v394 = vld [vmem:[%s1 + $0xbd8] sm:$0xff]
    %v395 = vld [vmem:[%s1 + $0xbe0] sm:$0xff]
    %v396 = vld [vmem:[%s1 + $0xbe8] sm:$0xff]
    %v397 = vld [vmem:[%s1 + $0xbf0] sm:$0xff]
    %v398 = vld [vmem:[%s1 + $0xbf8] sm:$0xff]
    %v399 = vld [vmem:[%s1 + $0xc00] sm:$0xff]
    %v400 = vld [vmem:[%s1 + $0xc08] sm:$0xff]
    %v401 = vld [vmem:[%s1 + $0xc10] sm:$0xff]
    %v402 = vld [vmem:[%s1 + $0xc18] sm:$0xff]
    %v403 = vld [vmem:[%s1 + $0xc20] sm:$0xff]
    %v404 = vld [vmem:[%s1 + $0xc28] sm:$0xff]
    %v405 = vld [vmem:[%s1 + $0xc30] sm:$0xff]
    %v406 = vld [vmem:[%s1 + $0xc38] sm:$0xff]
    %v407 = vld [vmem:[%s1 + $0xc40] sm:$0xff]
    %v408 = vld [vmem:[%s1 + $0xc48] sm:$0xff]
    %v409 = vld [vmem:[%s1 + $0xc50] sm:$0xff]
    %v410 = vld [vmem:[%s1 + $0xc58] sm:$0xff]
    %v411 = vld [vmem:[%s1 + $0xc60] sm:$0xff]
    %v412 = vld [vmem:[%s1 + $0xc68] sm:$0xff]
    %v413 = vld [vmem:[%s1 + $0xc70] sm:$0xff]
    %v414 = vld [vmem:[%s1 + $0xc78] sm:$0xff]
    %v415 = vld [vmem:[%s1 + $0xc80] sm:$0xff]
    %v416 = vld [vmem:[%s1 + $0xc88] sm:$0xff]
    %v417 = vld [vmem:[%s1 + $0xc90] sm:$0xff]
    %v418 = vld [vmem:[%s1 + $0xc98] sm:$0xff]
    %v419 = vld [vmem:[%s1 + $0xca0] sm:$0xff]
    %v420 = vld [vmem:[%s1 + $0xca8] sm:$0xff]
    %v421 = vld [vmem:[%s1 + $0xcb0] sm:$0xff]
    %v422 = vld [vmem:[%s1 + $0xcb8] sm:$0xff]
    %v423 = vld [vmem:[%s1 + $0xcc0] sm:$0xff]
    %v424 = vld [vmem:[%s1 + $0xcc8] sm:$0xff]
    %v425 = vld [vmem:[%s1 + $0xcd0] sm:$0xff]
    %v426 = vld [vmem:[%s1 + $0xcd8] sm:$0xff]
    %v427 = vld [vmem:[%s1 + $0xce0] sm:$0xff]
    %v428 = vld [vmem:[%s1 + $0xce8] sm:$0xff]
    %v429 = vld [vmem:[%s1 + $0xcf0] sm:$0xff]
    %v430 = vld [vmem:[%s1 + $0xcf8] sm:$0xff]
    %v431 = vld [vmem:[%s1 + $0xd00] sm:$0xff]
    %v432 = vld [vmem:[%s1 + $0xd08] sm:$0xff]
    %v433 = vld [vmem:[%s1 + $0xd10] sm:$0xff]
    %v434 = vld [vmem:[%s1 + $0xd18] sm:$0xff]
    %v435 = vld [vmem:[%s1 + $0xd20] sm:$0xff]
    %v436 = vld [vmem:[%s1 + $0xd28] sm:$0xff]
    %v437 = vld [vmem:[%s1 + $0xd30] sm:$0xff]
    %v438 = vld [vmem:[%s1 + $0xd38] sm:$0xff]
    %v439 = vld [vmem:[%s1 + $0xd40] sm:$0xff]
    %v440 = vld [vmem:[%s1 + $0xd48] sm:$0xff]
    %v441 = vld [vmem:[%s1 + $0xd50] sm:$0xff]
    %v442 = vld [vmem:[%s1 + $0xd58] sm:$0xff]
    %v443 = vld [vmem:[%s1 + $0xd60] sm:$0xff]
    %v444 = vld [vmem:[%s1 + $0xd68] sm:$0xff]
    %v445 = vld [vmem:[%s1 + $0xd70] sm:$0xff]
    %v446 = vld [vmem:[%s1 + $0xd78] sm:$0xff]
    %v447 = vld [vmem:[%s1 + $0xd80] sm:$0xff]
    %v448 = vld [vmem:[%s1 + $0xd88] sm:$0xff]
    %v449 = vld [vmem:[%s1 + $0xd90] sm:$0xff]
    %v450 = vld [vmem:[%s1 + $0xd98] sm:$0xff]
    %v451 = vld [vmem:[%s1 + $0xda0] sm:$0xff]
    %v452 = vld [vmem:[%s1 + $0xda8] sm:$0xff]
    %v453 = vld [vmem:[%s1 + $0xdb0] sm:$0xff]
    %v454 = vld [vmem:[%s1 + $0xdb8] sm:$0xff]
    %v455 = vld [vmem:[%s1 + $0xdc0] sm:$0xff]
    %v456 = vld [vmem:[%s1 + $0xdc8] sm:$0xff]
    %v457 = vld [vmem:[%s1 + $0xdd0] sm:$0xff]
    %v458 = vld [vmem:[%s1 + $0xdd8] sm:$0xff]
    %v459 = vld [vmem:[%s1 + $0xde0] sm:$0xff]
    %v460 = vld [vmem:[%s1 + $0xde8] sm:$0xff]
    %v461 = vld [vmem:[%s1 + $0xdf0] sm:$0xff]
    %v462 = vld [vmem:[%s1 + $0xdf8] sm:$0xff]
    %v463 = vld [vmem:[%s1 + $0xe00] sm:$0xff]
    %v464 = vld [vmem:[%s1 + $0xe08] sm:$0xff]
    %v465 = vld [vmem:[%s1 + $0xe10] sm:$0xff]
    %v466 = vld [vmem:[%s1 + $0xe18] sm:$0xff]
    %v467 = vld [vmem:[%s1 + $0xe20] sm:$0xff]
    %v468 = vld [vmem:[%s1 + $0xe28] sm:$0xff]
    %v469 = vld [vmem:[%s1 + $0xe30] sm:$0xff]
    %v470 = vld [vmem:[%s1 + $0xe38] sm:$0xff]
    %v471 = vld [vmem:[%s1 + $0xe40] sm:$0xff]
    %v472 = vld [vmem:[%s1 + $0xe48] sm:$0xff]
    %v473 = vld [vmem:[%s1 + $0xe50] sm:$0xff]
    %v474 = vld [vmem:[%s1 + $0xe58] sm:$0xff]
    %v475 = vld [vmem:[%s1 + $0xe60] sm:$0xff]
    %v476 = vld [vmem:[%s1 + $0xe68] sm:$0xff]
    %v477 = vld [vmem:[%s1 + $0xe70] sm:$0xff]
    %v478 = vld [vmem:[%s1 + $0xe78] sm:$0xff]
    %v479 = vld [vmem:[%s1 + $0xe80] sm:$0xff]
    %v480 = vld [vmem:[%s1 + $0xe88] sm:$0xff]
    %v481 = vld [vmem:[%s1 + $0xe90] sm:$0xff]
    %v482 = vld [vmem:[%s1 + $0xe98] sm:$0xff]
    %v483 = vld [vmem:[%s1 + $0xea0] sm:$0xff]
    %v484 = vld [vmem:[%s1 + $0xea8] sm:$0xff]
    %v485 = vld [vmem:[%s1 + $0xeb0] sm:$0xff]
    %v486 = vld [vmem:[%s1 + $0xeb8] sm:$0xff]
    %v487 = vld [vmem:[%s1 + $0xec0] sm:$0xff]
    %v488 = vld [vmem:[%s1 + $0xec8] sm:$0xff]
    %v489 = vld [vmem:[%s1 + $0xed0] sm:$0xff]
    %v490 = vld [vmem:[%s1 + $0xed8] sm:$0xff]
    %v491 = vld [vmem:[%s1 + $0xee0] sm:$0xff]
    %v492 = vld [vmem:[%s1 + $0xee8] sm:$0xff]
    %v493 = vld [vmem:[%s1 + $0xef0] sm:$0xff]
    %v494 = vld [vmem:[%s1 + $0xef8] sm:$0xff]
    %v495 = vld [vmem:[%s1 + $0xf00] sm:$0xff]
    %v496 = vld [vmem:[%s1 + $0xf08] sm:$0xff]
    %v497 = vld [vmem:[%s1 + $0xf10] sm:$0xff]
    %v498 = vld [vmem:[%s1 + $0xf18] sm:$0xff]
    %v499 = vld [vmem:[%s1 + $0xf20] sm:$0xff]
    %v500 = vld [vmem:[%s1 + $0xf28] sm:$0xff]
    %v501 = vld [vmem:[%s1 + $0xf30] sm:$0xff]
    %v502 = vld [vmem:[%s1 + $0xf38] sm:$0xff]
    %v503 = vld [vmem:[%s1 + $0xf40] sm:$0xff]
    %v504 = vld [vmem:[%s1 + $0xf48] sm:$0xff]
    %v505 = vld [vmem:[%s1 + $0xf50] sm:$0xff]
    %v506 = vld [vmem:[%s1 + $0xf58] sm:$0xff]
    %v507 = vld [vmem:[%s1 + $0xf60] sm:$0xff]
    %v508 = vld [vmem:[%s1 + $0xf68] sm:$0xff]
    %v509 = vld [vmem:[%s1 + $0xf70] sm:$0xff]
    %v510 = vld [vmem:[%s1 + $0xf78] sm:$0xff]
    %v511 = vld [vmem:[%s1 + $0xf80] sm:$0xff]
    %v512 = vld [vmem:[%s1 + $0xf88] sm:$0xff]
    %v513 = vld [vmem:[%s1 + $0xf90] sm:$0xff]
    %v514 = vld [vmem:[%s1 + $0xf98] sm:$0xff]
    %v515 = vld [vmem:[%s1 + $0xfa0] sm:$0xff]
    %v516 = vld [vmem:[%s1 + $0xfa8] sm:$0xff]
    %v517 = vld [vmem:[%s1 + $0xfb0] sm:$0xff]
    %v518 = vld [vmem:[%s1 + $0xfb8] sm:$0xff]
    %v519 = vld [vmem:[%s1 + $0xfc0] sm:$0xff]
    %v520 = vld [vmem:[%s1 + $0xfc8] sm:$0xff]
    %v521 = vld [vmem:[%s1 + $0xfd0] sm:$0xff]
    %v522 = vld [vmem:[%s1 + $0xfd8] sm:$0xff]
    %v523 = vld [vmem:[%s1 + $0xfe0] sm:$0xff]
    %v524 = vld [vmem:[%s1 + $0xfe8] sm:$0xff]
    %v525 = vld [vmem:[%s1 + $0xff0] sm:$0xff]
    %v526 = vld [vmem:[%s1 + $0xff8] sm:$0xff]
    %vm527 = vcmask 130048
    %v528 = vsel %vm527, %v15, 0.0
    %v529 = vsel %vm527, %v143, 0.0
    %v530 = vadd.f32 %v528, %v529
    %v531 = vsel %vm527, %v271, 0.0
    %v532 = vadd.f32 %v530, %v531
    %v533 = vsel %vm527, %v399, 0.0
    %v534 = vadd.f32 %v532, %v533
    %v535 = vsel %vm527, %v16, 0.0
    %v536 = vsel %vm527, %v144, 0.0
    %v537 = vadd.f32 %v535, %v536
    %v538 = vsel %vm527, %v272, 0.0
    %v539 = vadd.f32 %v537, %v538
    %v540 = vsel %vm527, %v400, 0.0
    %v541 = vadd.f32 %v539, %v540
    %v542 = vsel %vm527, %v17, 0.0
    %v543 = vsel %vm527, %v145, 0.0
    %v544 = vadd.f32 %v542, %v543
    %v545 = vsel %vm527, %v273, 0.0
    %v546 = vadd.f32 %v544, %v545
    %v547 = vsel %vm527, %v401, 0.0
    %v548 = vadd.f32 %v546, %v547
    %v549 = vsel %vm527, %v18, 0.0
    %v550 = vsel %vm527, %v146, 0.0
    %v551 = vadd.f32 %v549, %v550
    %v552 = vsel %vm527, %v274, 0.0
    %v553 = vadd.f32 %v551, %v552
    %v554 = vsel %vm527, %v402, 0.0
    %v555 = vadd.f32 %v553, %v554
    %v556 = vsel %vm527, %v19, 0.0
    %v557 = vsel %vm527, %v147, 0.0
    %v558 = vadd.f32 %v556, %v557
    %v559 = vsel %vm527, %v275, 0.0
    %v560 = vadd.f32 %v558, %v559
    %v561 = vsel %vm527, %v403, 0.0
    %v562 = vadd.f32 %v560, %v561
    %v563 = vsel %vm527, %v20, 0.0
    %v564 = vsel %vm527, %v148, 0.0
    %v565 = vadd.f32 %v563, %v564
    %v566 = vsel %vm527, %v276, 0.0
    %v567 = vadd.f32 %v565, %v566
    %v568 = vsel %vm527, %v404, 0.0
    %v569 = vadd.f32 %v567, %v568
    %v570 = vsel %vm527, %v21, 0.0
    %v571 = vsel %vm527, %v149, 0.0
    %v572 = vadd.f32 %v570, %v571
    %v573 = vsel %vm527, %v277, 0.0
    %v574 = vadd.f32 %v572, %v573
    %v575 = vsel %vm527, %v405, 0.0
    %v576 = vadd.f32 %v574, %v575
    %v577 = vsel %vm527, %v22, 0.0
    %v578 = vsel %vm527, %v150, 0.0
    %v579 = vadd.f32 %v577, %v578
    %v580 = vsel %vm527, %v278, 0.0
    %v581 = vadd.f32 %v579, %v580
    %v582 = vsel %vm527, %v406, 0.0
    %v583 = vadd.f32 %v581, %v582
    %v584 = vsel %vm527, %v23, 0.0
    %v585 = vsel %vm527, %v151, 0.0
    %v586 = vadd.f32 %v584, %v585
    %v587 = vsel %vm527, %v279, 0.0
    %v588 = vadd.f32 %v586, %v587
    %v589 = vsel %vm527, %v407, 0.0
    %v590 = vadd.f32 %v588, %v589
    %v591 = vsel %vm527, %v24, 0.0
    %v592 = vsel %vm527, %v152, 0.0
    %v593 = vadd.f32 %v591, %v592
    %v594 = vsel %vm527, %v280, 0.0
    %v595 = vadd.f32 %v593, %v594
    %v596 = vsel %vm527, %v408, 0.0
    %v597 = vadd.f32 %v595, %v596
    %v598 = vsel %vm527, %v25, 0.0
    %v599 = vsel %vm527, %v153, 0.0
    %v600 = vadd.f32 %v598, %v599
    %v601 = vsel %vm527, %v281, 0.0
    %v602 = vadd.f32 %v600, %v601
    %v603 = vsel %vm527, %v409, 0.0
    %v604 = vadd.f32 %v602, %v603
    %v605 = vsel %vm527, %v26, 0.0
    %v606 = vsel %vm527, %v154, 0.0
    %v607 = vadd.f32 %v605, %v606
    %v608 = vsel %vm527, %v282, 0.0
    %v609 = vadd.f32 %v607, %v608
    %v610 = vsel %vm527, %v410, 0.0
    %v611 = vadd.f32 %v609, %v610
    %v612 = vsel %vm527, %v27, 0.0
    %v613 = vsel %vm527, %v155, 0.0
    %v614 = vadd.f32 %v612, %v613
    %v615 = vsel %vm527, %v283, 0.0
    %v616 = vadd.f32 %v614, %v615
    %v617 = vsel %vm527, %v411, 0.0
    %v618 = vadd.f32 %v616, %v617
    %v619 = vsel %vm527, %v28, 0.0
    %v620 = vsel %vm527, %v156, 0.0
    %v621 = vadd.f32 %v619, %v620
    %v622 = vsel %vm527, %v284, 0.0
    %v623 = vadd.f32 %v621, %v622
    %v624 = vsel %vm527, %v412, 0.0
    %v625 = vadd.f32 %v623, %v624
    %v626 = vsel %vm527, %v29, 0.0
    %v627 = vsel %vm527, %v157, 0.0
    %v628 = vadd.f32 %v626, %v627
    %v629 = vsel %vm527, %v285, 0.0
    %v630 = vadd.f32 %v628, %v629
    %v631 = vsel %vm527, %v413, 0.0
    %v632 = vadd.f32 %v630, %v631
    %v633 = vsel %vm527, %v30, 0.0
    %v634 = vsel %vm527, %v158, 0.0
    %v635 = vadd.f32 %v633, %v634
    %v636 = vsel %vm527, %v286, 0.0
    %v637 = vadd.f32 %v635, %v636
    %v638 = vsel %vm527, %v414, 0.0
    %v639 = vadd.f32 %v637, %v638
    %v640 = vsel %vm527, %v31, 0.0
    %v641 = vsel %vm527, %v159, 0.0
    %v642 = vadd.f32 %v640, %v641
    %v643 = vsel %vm527, %v287, 0.0
    %v644 = vadd.f32 %v642, %v643
    %v645 = vsel %vm527, %v415, 0.0
    %v646 = vadd.f32 %v644, %v645
    %v647 = vsel %vm527, %v32, 0.0
    %v648 = vsel %vm527, %v160, 0.0
    %v649 = vadd.f32 %v647, %v648
    %v650 = vsel %vm527, %v288, 0.0
    %v651 = vadd.f32 %v649, %v650
    %v652 = vsel %vm527, %v416, 0.0
    %v653 = vadd.f32 %v651, %v652
    %v654 = vsel %vm527, %v33, 0.0
    %v655 = vsel %vm527, %v161, 0.0
    %v656 = vadd.f32 %v654, %v655
    %v657 = vsel %vm527, %v289, 0.0
    %v658 = vadd.f32 %v656, %v657
    %v659 = vsel %vm527, %v417, 0.0
    %v660 = vadd.f32 %v658, %v659
    %v661 = vsel %vm527, %v34, 0.0
    %v662 = vsel %vm527, %v162, 0.0
    %v663 = vadd.f32 %v661, %v662
    %v664 = vsel %vm527, %v290, 0.0
    %v665 = vadd.f32 %v663, %v664
    %v666 = vsel %vm527, %v418, 0.0
    %v667 = vadd.f32 %v665, %v666
    %v668 = vsel %vm527, %v35, 0.0
    %v669 = vsel %vm527, %v163, 0.0
    %v670 = vadd.f32 %v668, %v669
    %v671 = vsel %vm527, %v291, 0.0
    %v672 = vadd.f32 %v670, %v671
    %v673 = vsel %vm527, %v419, 0.0
    %v674 = vadd.f32 %v672, %v673
    %v675 = vsel %vm527, %v36, 0.0
    %v676 = vsel %vm527, %v164, 0.0
    %v677 = vadd.f32 %v675, %v676
    %v678 = vsel %vm527, %v292, 0.0
    %v679 = vadd.f32 %v677, %v678
    %v680 = vsel %vm527, %v420, 0.0
    %v681 = vadd.f32 %v679, %v680
    %v682 = vsel %vm527, %v37, 0.0
    %v683 = vsel %vm527, %v165, 0.0
    %v684 = vadd.f32 %v682, %v683
    %v685 = vsel %vm527, %v293, 0.0
    %v686 = vadd.f32 %v684, %v685
    %v687 = vsel %vm527, %v421, 0.0
    %v688 = vadd.f32 %v686, %v687
    %v689 = vsel %vm527, %v38, 0.0
    %v690 = vsel %vm527, %v166, 0.0
    %v691 = vadd.f32 %v689, %v690
    %v692 = vsel %vm527, %v294, 0.0
    %v693 = vadd.f32 %v691, %v692
    %v694 = vsel %vm527, %v422, 0.0
    %v695 = vadd.f32 %v693, %v694
    %v696 = vsel %vm527, %v39, 0.0
    %v697 = vsel %vm527, %v167, 0.0
    %v698 = vadd.f32 %v696, %v697
    %v699 = vsel %vm527, %v295, 0.0
    %v700 = vadd.f32 %v698, %v699
    %v701 = vsel %vm527, %v423, 0.0
    %v702 = vadd.f32 %v700, %v701
    %v703 = vsel %vm527, %v40, 0.0
    %v704 = vsel %vm527, %v168, 0.0
    %v705 = vadd.f32 %v703, %v704
    %v706 = vsel %vm527, %v296, 0.0
    %v707 = vadd.f32 %v705, %v706
    %v708 = vsel %vm527, %v424, 0.0
    %v709 = vadd.f32 %v707, %v708
    %v710 = vsel %vm527, %v41, 0.0
    %v711 = vsel %vm527, %v169, 0.0
    %v712 = vadd.f32 %v710, %v711
    %v713 = vsel %vm527, %v297, 0.0
    %v714 = vadd.f32 %v712, %v713
    %v715 = vsel %vm527, %v425, 0.0
    %v716 = vadd.f32 %v714, %v715
    %v717 = vsel %vm527, %v42, 0.0
    %v718 = vsel %vm527, %v170, 0.0
    %v719 = vadd.f32 %v717, %v718
    %v720 = vsel %vm527, %v298, 0.0
    %v721 = vadd.f32 %v719, %v720
    %v722 = vsel %vm527, %v426, 0.0
    %v723 = vadd.f32 %v721, %v722
    %v724 = vsel %vm527, %v43, 0.0
    %v725 = vsel %vm527, %v171, 0.0
    %v726 = vadd.f32 %v724, %v725
    %v727 = vsel %vm527, %v299, 0.0
    %v728 = vadd.f32 %v726, %v727
    %v729 = vsel %vm527, %v427, 0.0
    %v730 = vadd.f32 %v728, %v729
    %v731 = vsel %vm527, %v44, 0.0
    %v732 = vsel %vm527, %v172, 0.0
    %v733 = vadd.f32 %v731, %v732
    %v734 = vsel %vm527, %v300, 0.0
    %v735 = vadd.f32 %v733, %v734
    %v736 = vsel %vm527, %v428, 0.0
    %v737 = vadd.f32 %v735, %v736
    %v738 = vsel %vm527, %v45, 0.0
    %v739 = vsel %vm527, %v173, 0.0
    %v740 = vadd.f32 %v738, %v739
    %v741 = vsel %vm527, %v301, 0.0
    %v742 = vadd.f32 %v740, %v741
    %v743 = vsel %vm527, %v429, 0.0
    %v744 = vadd.f32 %v742, %v743
    %v745 = vsel %vm527, %v46, 0.0
    %v746 = vsel %vm527, %v174, 0.0
    %v747 = vadd.f32 %v745, %v746
    %v748 = vsel %vm527, %v302, 0.0
    %v749 = vadd.f32 %v747, %v748
    %v750 = vsel %vm527, %v430, 0.0
    %v751 = vadd.f32 %v749, %v750
    %v752 = vsel %vm527, %v47, 0.0
    %v753 = vsel %vm527, %v175, 0.0
    %v754 = vadd.f32 %v752, %v753
    %v755 = vsel %vm527, %v303, 0.0
    %v756 = vadd.f32 %v754, %v755
    %v757 = vsel %vm527, %v431, 0.0
    %v758 = vadd.f32 %v756, %v757
    %v759 = vsel %vm527, %v48, 0.0
    %v760 = vsel %vm527, %v176, 0.0
    %v761 = vadd.f32 %v759, %v760
    %v762 = vsel %vm527, %v304, 0.0
    %v763 = vadd.f32 %v761, %v762
    %v764 = vsel %vm527, %v432, 0.0
    %v765 = vadd.f32 %v763, %v764
    %v766 = vsel %vm527, %v49, 0.0
    %v767 = vsel %vm527, %v177, 0.0
    %v768 = vadd.f32 %v766, %v767
    %v769 = vsel %vm527, %v305, 0.0
    %v770 = vadd.f32 %v768, %v769
    %v771 = vsel %vm527, %v433, 0.0
    %v772 = vadd.f32 %v770, %v771
    %v773 = vsel %vm527, %v50, 0.0
    %v774 = vsel %vm527, %v178, 0.0
    %v775 = vadd.f32 %v773, %v774
    %v776 = vsel %vm527, %v306, 0.0
    %v777 = vadd.f32 %v775, %v776
    %v778 = vsel %vm527, %v434, 0.0
    %v779 = vadd.f32 %v777, %v778
    %v780 = vsel %vm527, %v51, 0.0
    %v781 = vsel %vm527, %v179, 0.0
    %v782 = vadd.f32 %v780, %v781
    %v783 = vsel %vm527, %v307, 0.0
    %v784 = vadd.f32 %v782, %v783
    %v785 = vsel %vm527, %v435, 0.0
    %v786 = vadd.f32 %v784, %v785
    %v787 = vsel %vm527, %v52, 0.0
    %v788 = vsel %vm527, %v180, 0.0
    %v789 = vadd.f32 %v787, %v788
    %v790 = vsel %vm527, %v308, 0.0
    %v791 = vadd.f32 %v789, %v790
    %v792 = vsel %vm527, %v436, 0.0
    %v793 = vadd.f32 %v791, %v792
    %v794 = vsel %vm527, %v53, 0.0
    %v795 = vsel %vm527, %v181, 0.0
    %v796 = vadd.f32 %v794, %v795
    %v797 = vsel %vm527, %v309, 0.0
    %v798 = vadd.f32 %v796, %v797
    %v799 = vsel %vm527, %v437, 0.0
    %v800 = vadd.f32 %v798, %v799
    %v801 = vsel %vm527, %v54, 0.0
    %v802 = vsel %vm527, %v182, 0.0
    %v803 = vadd.f32 %v801, %v802
    %v804 = vsel %vm527, %v310, 0.0
    %v805 = vadd.f32 %v803, %v804
    %v806 = vsel %vm527, %v438, 0.0
    %v807 = vadd.f32 %v805, %v806
    %v808 = vsel %vm527, %v55, 0.0
    %v809 = vsel %vm527, %v183, 0.0
    %v810 = vadd.f32 %v808, %v809
    %v811 = vsel %vm527, %v311, 0.0
    %v812 = vadd.f32 %v810, %v811
    %v813 = vsel %vm527, %v439, 0.0
    %v814 = vadd.f32 %v812, %v813
    %v815 = vsel %vm527, %v56, 0.0
    %v816 = vsel %vm527, %v184, 0.0
    %v817 = vadd.f32 %v815, %v816
    %v818 = vsel %vm527, %v312, 0.0
    %v819 = vadd.f32 %v817, %v818
    %v820 = vsel %vm527, %v440, 0.0
    %v821 = vadd.f32 %v819, %v820
    %v822 = vsel %vm527, %v57, 0.0
    %v823 = vsel %vm527, %v185, 0.0
    %v824 = vadd.f32 %v822, %v823
    %v825 = vsel %vm527, %v313, 0.0
    %v826 = vadd.f32 %v824, %v825
    %v827 = vsel %vm527, %v441, 0.0
    %v828 = vadd.f32 %v826, %v827
    %v829 = vsel %vm527, %v58, 0.0
    %v830 = vsel %vm527, %v186, 0.0
    %v831 = vadd.f32 %v829, %v830
    %v832 = vsel %vm527, %v314, 0.0
    %v833 = vadd.f32 %v831, %v832
    %v834 = vsel %vm527, %v442, 0.0
    %v835 = vadd.f32 %v833, %v834
    %v836 = vsel %vm527, %v59, 0.0
    %v837 = vsel %vm527, %v187, 0.0
    %v838 = vadd.f32 %v836, %v837
    %v839 = vsel %vm527, %v315, 0.0
    %v840 = vadd.f32 %v838, %v839
    %v841 = vsel %vm527, %v443, 0.0
    %v842 = vadd.f32 %v840, %v841
    %v843 = vsel %vm527, %v60, 0.0
    %v844 = vsel %vm527, %v188, 0.0
    %v845 = vadd.f32 %v843, %v844
    %v846 = vsel %vm527, %v316, 0.0
    %v847 = vadd.f32 %v845, %v846
    %v848 = vsel %vm527, %v444, 0.0
    %v849 = vadd.f32 %v847, %v848
    %v850 = vsel %vm527, %v61, 0.0
    %v851 = vsel %vm527, %v189, 0.0
    %v852 = vadd.f32 %v850, %v851
    %v853 = vsel %vm527, %v317, 0.0
    %v854 = vadd.f32 %v852, %v853
    %v855 = vsel %vm527, %v445, 0.0
    %v856 = vadd.f32 %v854, %v855
    %v857 = vsel %vm527, %v62, 0.0
    %v858 = vsel %vm527, %v190, 0.0
    %v859 = vadd.f32 %v857, %v858
    %v860 = vsel %vm527, %v318, 0.0
    %v861 = vadd.f32 %v859, %v860
    %v862 = vsel %vm527, %v446, 0.0
    %v863 = vadd.f32 %v861, %v862
    %v864 = vsel %vm527, %v63, 0.0
    %v865 = vsel %vm527, %v191, 0.0
    %v866 = vadd.f32 %v864, %v865
    %v867 = vsel %vm527, %v319, 0.0
    %v868 = vadd.f32 %v866, %v867
    %v869 = vsel %vm527, %v447, 0.0
    %v870 = vadd.f32 %v868, %v869
    %v871 = vsel %vm527, %v64, 0.0
    %v872 = vsel %vm527, %v192, 0.0
    %v873 = vadd.f32 %v871, %v872
    %v874 = vsel %vm527, %v320, 0.0
    %v875 = vadd.f32 %v873, %v874
    %v876 = vsel %vm527, %v448, 0.0
    %v877 = vadd.f32 %v875, %v876
    %v878 = vsel %vm527, %v65, 0.0
    %v879 = vsel %vm527, %v193, 0.0
    %v880 = vadd.f32 %v878, %v879
    %v881 = vsel %vm527, %v321, 0.0
    %v882 = vadd.f32 %v880, %v881
    %v883 = vsel %vm527, %v449, 0.0
    %v884 = vadd.f32 %v882, %v883
    %v885 = vsel %vm527, %v66, 0.0
    %v886 = vsel %vm527, %v194, 0.0
    %v887 = vadd.f32 %v885, %v886
    %v888 = vsel %vm527, %v322, 0.0
    %v889 = vadd.f32 %v887, %v888
    %v890 = vsel %vm527, %v450, 0.0
    %v891 = vadd.f32 %v889, %v890
    %v892 = vsel %vm527, %v67, 0.0
    %v893 = vsel %vm527, %v195, 0.0
    %v894 = vadd.f32 %v892, %v893
    %v895 = vsel %vm527, %v323, 0.0
    %v896 = vadd.f32 %v894, %v895
    %v897 = vsel %vm527, %v451, 0.0
    %v898 = vadd.f32 %v896, %v897
    %v899 = vsel %vm527, %v68, 0.0
    %v900 = vsel %vm527, %v196, 0.0
    %v901 = vadd.f32 %v899, %v900
    %v902 = vsel %vm527, %v324, 0.0
    %v903 = vadd.f32 %v901, %v902
    %v904 = vsel %vm527, %v452, 0.0
    %v905 = vadd.f32 %v903, %v904
    %v906 = vsel %vm527, %v69, 0.0
    %v907 = vsel %vm527, %v197, 0.0
    %v908 = vadd.f32 %v906, %v907
    %v909 = vsel %vm527, %v325, 0.0
    %v910 = vadd.f32 %v908, %v909
    %v911 = vsel %vm527, %v453, 0.0
    %v912 = vadd.f32 %v910, %v911
    %v913 = vsel %vm527, %v70, 0.0
    %v914 = vsel %vm527, %v198, 0.0
    %v915 = vadd.f32 %v913, %v914
    %v916 = vsel %vm527, %v326, 0.0
    %v917 = vadd.f32 %v915, %v916
    %v918 = vsel %vm527, %v454, 0.0
    %v919 = vadd.f32 %v917, %v918
    %v920 = vsel %vm527, %v71, 0.0
    %v921 = vsel %vm527, %v199, 0.0
    %v922 = vadd.f32 %v920, %v921
    %v923 = vsel %vm527, %v327, 0.0
    %v924 = vadd.f32 %v922, %v923
    %v925 = vsel %vm527, %v455, 0.0
    %v926 = vadd.f32 %v924, %v925
    %v927 = vsel %vm527, %v72, 0.0
    %v928 = vsel %vm527, %v200, 0.0
    %v929 = vadd.f32 %v927, %v928
    %v930 = vsel %vm527, %v328, 0.0
    %v931 = vadd.f32 %v929, %v930
    %v932 = vsel %vm527, %v456, 0.0
    %v933 = vadd.f32 %v931, %v932
    %v934 = vsel %vm527, %v73, 0.0
    %v935 = vsel %vm527, %v201, 0.0
    %v936 = vadd.f32 %v934, %v935
    %v937 = vsel %vm527, %v329, 0.0
    %v938 = vadd.f32 %v936, %v937
    %v939 = vsel %vm527, %v457, 0.0
    %v940 = vadd.f32 %v938, %v939
    %v941 = vsel %vm527, %v74, 0.0
    %v942 = vsel %vm527, %v202, 0.0
    %v943 = vadd.f32 %v941, %v942
    %v944 = vsel %vm527, %v330, 0.0
    %v945 = vadd.f32 %v943, %v944
    %v946 = vsel %vm527, %v458, 0.0
    %v947 = vadd.f32 %v945, %v946
    %v948 = vsel %vm527, %v75, 0.0
    %v949 = vsel %vm527, %v203, 0.0
    %v950 = vadd.f32 %v948, %v949
    %v951 = vsel %vm527, %v331, 0.0
    %v952 = vadd.f32 %v950, %v951
    %v953 = vsel %vm527, %v459, 0.0
    %v954 = vadd.f32 %v952, %v953
    %v955 = vsel %vm527, %v76, 0.0
    %v956 = vsel %vm527, %v204, 0.0
    %v957 = vadd.f32 %v955, %v956
    %v958 = vsel %vm527, %v332, 0.0
    %v959 = vadd.f32 %v957, %v958
    %v960 = vsel %vm527, %v460, 0.0
    %v961 = vadd.f32 %v959, %v960
    %v962 = vsel %vm527, %v77, 0.0
    %v963 = vsel %vm527, %v205, 0.0
    %v964 = vadd.f32 %v962, %v963
    %v965 = vsel %vm527, %v333, 0.0
    %v966 = vadd.f32 %v964, %v965
    %v967 = vsel %vm527, %v461, 0.0
    %v968 = vadd.f32 %v966, %v967
    %v969 = vsel %vm527, %v78, 0.0
    %v970 = vsel %vm527, %v206, 0.0
    %v971 = vadd.f32 %v969, %v970
    %v972 = vsel %vm527, %v334, 0.0
    %v973 = vadd.f32 %v971, %v972
    %v974 = vsel %vm527, %v462, 0.0
    %v975 = vadd.f32 %v973, %v974
    %v976 = vsel %vm527, %v79, 0.0
    %v977 = vsel %vm527, %v207, 0.0
    %v978 = vadd.f32 %v976, %v977
    %v979 = vsel %vm527, %v335, 0.0
    %v980 = vadd.f32 %v978, %v979
    %v981 = vsel %vm527, %v463, 0.0
    %v982 = vadd.f32 %v980, %v981
    %v983 = vsel %vm527, %v80, 0.0
    %v984 = vsel %vm527, %v208, 0.0
    %v985 = vadd.f32 %v983, %v984
    %v986 = vsel %vm527, %v336, 0.0
    %v987 = vadd.f32 %v985, %v986
    %v988 = vsel %vm527, %v464, 0.0
    %v989 = vadd.f32 %v987, %v988
    %v990 = vsel %vm527, %v81, 0.0
    %v991 = vsel %vm527, %v209, 0.0
    %v992 = vadd.f32 %v990, %v991
    %v993 = vsel %vm527, %v337, 0.0
    %v994 = vadd.f32 %v992, %v993
    %v995 = vsel %vm527, %v465, 0.0
    %v996 = vadd.f32 %v994, %v995
    %v997 = vsel %vm527, %v82, 0.0
    %v998 = vsel %vm527, %v210, 0.0
    %v999 = vadd.f32 %v997, %v998
    %v1000 = vsel %vm527, %v338, 0.0
    %v1001 = vadd.f32 %v999, %v1000
    %v1002 = vsel %vm527, %v466, 0.0
    %v1003 = vadd.f32 %v1001, %v1002
    %v1004 = vsel %vm527, %v83, 0.0
    %v1005 = vsel %vm527, %v211, 0.0
    %v1006 = vadd.f32 %v1004, %v1005
    %v1007 = vsel %vm527, %v339, 0.0
    %v1008 = vadd.f32 %v1006, %v1007
    %v1009 = vsel %vm527, %v467, 0.0
    %v1010 = vadd.f32 %v1008, %v1009
    %v1011 = vsel %vm527, %v84, 0.0
    %v1012 = vsel %vm527, %v212, 0.0
    %v1013 = vadd.f32 %v1011, %v1012
    %v1014 = vsel %vm527, %v340, 0.0
    %v1015 = vadd.f32 %v1013, %v1014
    %v1016 = vsel %vm527, %v468, 0.0
    %v1017 = vadd.f32 %v1015, %v1016
    %v1018 = vsel %vm527, %v85, 0.0
    %v1019 = vsel %vm527, %v213, 0.0
    %v1020 = vadd.f32 %v1018, %v1019
    %v1021 = vsel %vm527, %v341, 0.0
    %v1022 = vadd.f32 %v1020, %v1021
    %v1023 = vsel %vm527, %v469, 0.0
    %v1024 = vadd.f32 %v1022, %v1023
    %v1025 = vsel %vm527, %v86, 0.0
    %v1026 = vsel %vm527, %v214, 0.0
    %v1027 = vadd.f32 %v1025, %v1026
    %v1028 = vsel %vm527, %v342, 0.0
    %v1029 = vadd.f32 %v1027, %v1028
    %v1030 = vsel %vm527, %v470, 0.0
    %v1031 = vadd.f32 %v1029, %v1030
    %v1032 = vsel %vm527, %v87, 0.0
    %v1033 = vsel %vm527, %v215, 0.0
    %v1034 = vadd.f32 %v1032, %v1033
    %v1035 = vsel %vm527, %v343, 0.0
    %v1036 = vadd.f32 %v1034, %v1035
    %v1037 = vsel %vm527, %v471, 0.0
    %v1038 = vadd.f32 %v1036, %v1037
    %v1039 = vsel %vm527, %v88, 0.0
    %v1040 = vsel %vm527, %v216, 0.0
    %v1041 = vadd.f32 %v1039, %v1040
    %v1042 = vsel %vm527, %v344, 0.0
    %v1043 = vadd.f32 %v1041, %v1042
    %v1044 = vsel %vm527, %v472, 0.0
    %v1045 = vadd.f32 %v1043, %v1044
    %v1046 = vsel %vm527, %v89, 0.0
    %v1047 = vsel %vm527, %v217, 0.0
    %v1048 = vadd.f32 %v1046, %v1047
    %v1049 = vsel %vm527, %v345, 0.0
    %v1050 = vadd.f32 %v1048, %v1049
    %v1051 = vsel %vm527, %v473, 0.0
    %v1052 = vadd.f32 %v1050, %v1051
    %v1053 = vsel %vm527, %v90, 0.0
    %v1054 = vsel %vm527, %v218, 0.0
    %v1055 = vadd.f32 %v1053, %v1054
    %v1056 = vsel %vm527, %v346, 0.0
    %v1057 = vadd.f32 %v1055, %v1056
    %v1058 = vsel %vm527, %v474, 0.0
    %v1059 = vadd.f32 %v1057, %v1058
    %v1060 = vsel %vm527, %v91, 0.0
    %v1061 = vsel %vm527, %v219, 0.0
    %v1062 = vadd.f32 %v1060, %v1061
    %v1063 = vsel %vm527, %v347, 0.0
    %v1064 = vadd.f32 %v1062, %v1063
    %v1065 = vsel %vm527, %v475, 0.0
    %v1066 = vadd.f32 %v1064, %v1065
    %v1067 = vsel %vm527, %v92, 0.0
    %v1068 = vsel %vm527, %v220, 0.0
    %v1069 = vadd.f32 %v1067, %v1068
    %v1070 = vsel %vm527, %v348, 0.0
    %v1071 = vadd.f32 %v1069, %v1070
    %v1072 = vsel %vm527, %v476, 0.0
    %v1073 = vadd.f32 %v1071, %v1072
    %v1074 = vsel %vm527, %v93, 0.0
    %v1075 = vsel %vm527, %v221, 0.0
    %v1076 = vadd.f32 %v1074, %v1075
    %v1077 = vsel %vm527, %v349, 0.0
    %v1078 = vadd.f32 %v1076, %v1077
    %v1079 = vsel %vm527, %v477, 0.0
    %v1080 = vadd.f32 %v1078, %v1079
    %v1081 = vsel %vm527, %v94, 0.0
    %v1082 = vsel %vm527, %v222, 0.0
    %v1083 = vadd.f32 %v1081, %v1082
    %v1084 = vsel %vm527, %v350, 0.0
    %v1085 = vadd.f32 %v1083, %v1084
    %v1086 = vsel %vm527, %v478, 0.0
    %v1087 = vadd.f32 %v1085, %v1086
    %v1088 = vsel %vm527, %v95, 0.0
    %v1089 = vsel %vm527, %v223, 0.0
    %v1090 = vadd.f32 %v1088, %v1089
    %v1091 = vsel %vm527, %v351, 0.0
    %v1092 = vadd.f32 %v1090, %v1091
    %v1093 = vsel %vm527, %v479, 0.0
    %v1094 = vadd.f32 %v1092, %v1093
    %v1095 = vsel %vm527, %v96, 0.0
    %v1096 = vsel %vm527, %v224, 0.0
    %v1097 = vadd.f32 %v1095, %v1096
    %v1098 = vsel %vm527, %v352, 0.0
    %v1099 = vadd.f32 %v1097, %v1098
    %v1100 = vsel %vm527, %v480, 0.0
    %v1101 = vadd.f32 %v1099, %v1100
    %v1102 = vsel %vm527, %v97, 0.0
    %v1103 = vsel %vm527, %v225, 0.0
    %v1104 = vadd.f32 %v1102, %v1103
    %v1105 = vsel %vm527, %v353, 0.0
    %v1106 = vadd.f32 %v1104, %v1105
    %v1107 = vsel %vm527, %v481, 0.0
    %v1108 = vadd.f32 %v1106, %v1107
    %v1109 = vsel %vm527, %v98, 0.0
    %v1110 = vsel %vm527, %v226, 0.0
    %v1111 = vadd.f32 %v1109, %v1110
    %v1112 = vsel %vm527, %v354, 0.0
    %v1113 = vadd.f32 %v1111, %v1112
    %v1114 = vsel %vm527, %v482, 0.0
    %v1115 = vadd.f32 %v1113, %v1114
    %v1116 = vsel %vm527, %v99, 0.0
    %v1117 = vsel %vm527, %v227, 0.0
    %v1118 = vadd.f32 %v1116, %v1117
    %v1119 = vsel %vm527, %v355, 0.0
    %v1120 = vadd.f32 %v1118, %v1119
    %v1121 = vsel %vm527, %v483, 0.0
    %v1122 = vadd.f32 %v1120, %v1121
    %v1123 = vsel %vm527, %v100, 0.0
    %v1124 = vsel %vm527, %v228, 0.0
    %v1125 = vadd.f32 %v1123, %v1124
    %v1126 = vsel %vm527, %v356, 0.0
    %v1127 = vadd.f32 %v1125, %v1126
    %v1128 = vsel %vm527, %v484, 0.0
    %v1129 = vadd.f32 %v1127, %v1128
    %v1130 = vsel %vm527, %v101, 0.0
    %v1131 = vsel %vm527, %v229, 0.0
    %v1132 = vadd.f32 %v1130, %v1131
    %v1133 = vsel %vm527, %v357, 0.0
    %v1134 = vadd.f32 %v1132, %v1133
    %v1135 = vsel %vm527, %v485, 0.0
    %v1136 = vadd.f32 %v1134, %v1135
    %v1137 = vsel %vm527, %v102, 0.0
    %v1138 = vsel %vm527, %v230, 0.0
    %v1139 = vadd.f32 %v1137, %v1138
    %v1140 = vsel %vm527, %v358, 0.0
    %v1141 = vadd.f32 %v1139, %v1140
    %v1142 = vsel %vm527, %v486, 0.0
    %v1143 = vadd.f32 %v1141, %v1142
    %v1144 = vsel %vm527, %v103, 0.0
    %v1145 = vsel %vm527, %v231, 0.0
    %v1146 = vadd.f32 %v1144, %v1145
    %v1147 = vsel %vm527, %v359, 0.0
    %v1148 = vadd.f32 %v1146, %v1147
    %v1149 = vsel %vm527, %v487, 0.0
    %v1150 = vadd.f32 %v1148, %v1149
    %v1151 = vsel %vm527, %v104, 0.0
    %v1152 = vsel %vm527, %v232, 0.0
    %v1153 = vadd.f32 %v1151, %v1152
    %v1154 = vsel %vm527, %v360, 0.0
    %v1155 = vadd.f32 %v1153, %v1154
    %v1156 = vsel %vm527, %v488, 0.0
    %v1157 = vadd.f32 %v1155, %v1156
    %v1158 = vsel %vm527, %v105, 0.0
    %v1159 = vsel %vm527, %v233, 0.0
    %v1160 = vadd.f32 %v1158, %v1159
    %v1161 = vsel %vm527, %v361, 0.0
    %v1162 = vadd.f32 %v1160, %v1161
    %v1163 = vsel %vm527, %v489, 0.0
    %v1164 = vadd.f32 %v1162, %v1163
    %v1165 = vsel %vm527, %v106, 0.0
    %v1166 = vsel %vm527, %v234, 0.0
    %v1167 = vadd.f32 %v1165, %v1166
    %v1168 = vsel %vm527, %v362, 0.0
    %v1169 = vadd.f32 %v1167, %v1168
    %v1170 = vsel %vm527, %v490, 0.0
    %v1171 = vadd.f32 %v1169, %v1170
    %v1172 = vsel %vm527, %v107, 0.0
    %v1173 = vsel %vm527, %v235, 0.0
    %v1174 = vadd.f32 %v1172, %v1173
    %v1175 = vsel %vm527, %v363, 0.0
    %v1176 = vadd.f32 %v1174, %v1175
    %v1177 = vsel %vm527, %v491, 0.0
    %v1178 = vadd.f32 %v1176, %v1177
    %v1179 = vsel %vm527, %v108, 0.0
    %v1180 = vsel %vm527, %v236, 0.0
    %v1181 = vadd.f32 %v1179, %v1180
    %v1182 = vsel %vm527, %v364, 0.0
    %v1183 = vadd.f32 %v1181, %v1182
    %v1184 = vsel %vm527, %v492, 0.0
    %v1185 = vadd.f32 %v1183, %v1184
    %v1186 = vsel %vm527, %v109, 0.0
    %v1187 = vsel %vm527, %v237, 0.0
    %v1188 = vadd.f32 %v1186, %v1187
    %v1189 = vsel %vm527, %v365, 0.0
    %v1190 = vadd.f32 %v1188, %v1189
    %v1191 = vsel %vm527, %v493, 0.0
    %v1192 = vadd.f32 %v1190, %v1191
    %v1193 = vsel %vm527, %v110, 0.0
    %v1194 = vsel %vm527, %v238, 0.0
    %v1195 = vadd.f32 %v1193, %v1194
    %v1196 = vsel %vm527, %v366, 0.0
    %v1197 = vadd.f32 %v1195, %v1196
    %v1198 = vsel %vm527, %v494, 0.0
    %v1199 = vadd.f32 %v1197, %v1198
    %v1200 = vsel %vm527, %v111, 0.0
    %v1201 = vsel %vm527, %v239, 0.0
    %v1202 = vadd.f32 %v1200, %v1201
    %v1203 = vsel %vm527, %v367, 0.0
    %v1204 = vadd.f32 %v1202, %v1203
    %v1205 = vsel %vm527, %v495, 0.0
    %v1206 = vadd.f32 %v1204, %v1205
    %v1207 = vsel %vm527, %v112, 0.0
    %v1208 = vsel %vm527, %v240, 0.0
    %v1209 = vadd.f32 %v1207, %v1208
    %v1210 = vsel %vm527, %v368, 0.0
    %v1211 = vadd.f32 %v1209, %v1210
    %v1212 = vsel %vm527, %v496, 0.0
    %v1213 = vadd.f32 %v1211, %v1212
    %v1214 = vsel %vm527, %v113, 0.0
    %v1215 = vsel %vm527, %v241, 0.0
    %v1216 = vadd.f32 %v1214, %v1215
    %v1217 = vsel %vm527, %v369, 0.0
    %v1218 = vadd.f32 %v1216, %v1217
    %v1219 = vsel %vm527, %v497, 0.0
    %v1220 = vadd.f32 %v1218, %v1219
    %v1221 = vsel %vm527, %v114, 0.0
    %v1222 = vsel %vm527, %v242, 0.0
    %v1223 = vadd.f32 %v1221, %v1222
    %v1224 = vsel %vm527, %v370, 0.0
    %v1225 = vadd.f32 %v1223, %v1224
    %v1226 = vsel %vm527, %v498, 0.0
    %v1227 = vadd.f32 %v1225, %v1226
    %v1228 = vsel %vm527, %v115, 0.0
    %v1229 = vsel %vm527, %v243, 0.0
    %v1230 = vadd.f32 %v1228, %v1229
    %v1231 = vsel %vm527, %v371, 0.0
    %v1232 = vadd.f32 %v1230, %v1231
    %v1233 = vsel %vm527, %v499, 0.0
    %v1234 = vadd.f32 %v1232, %v1233
    %v1235 = vsel %vm527, %v116, 0.0
    %v1236 = vsel %vm527, %v244, 0.0
    %v1237 = vadd.f32 %v1235, %v1236
    %v1238 = vsel %vm527, %v372, 0.0
    %v1239 = vadd.f32 %v1237, %v1238
    %v1240 = vsel %vm527, %v500, 0.0
    %v1241 = vadd.f32 %v1239, %v1240
    %v1242 = vsel %vm527, %v117, 0.0
    %v1243 = vsel %vm527, %v245, 0.0
    %v1244 = vadd.f32 %v1242, %v1243
    %v1245 = vsel %vm527, %v373, 0.0
    %v1246 = vadd.f32 %v1244, %v1245
    %v1247 = vsel %vm527, %v501, 0.0
    %v1248 = vadd.f32 %v1246, %v1247
    %v1249 = vsel %vm527, %v118, 0.0
    %v1250 = vsel %vm527, %v246, 0.0
    %v1251 = vadd.f32 %v1249, %v1250
    %v1252 = vsel %vm527, %v374, 0.0
    %v1253 = vadd.f32 %v1251, %v1252
    %v1254 = vsel %vm527, %v502, 0.0
    %v1255 = vadd.f32 %v1253, %v1254
    %v1256 = vsel %vm527, %v119, 0.0
    %v1257 = vsel %vm527, %v247, 0.0
    %v1258 = vadd.f32 %v1256, %v1257
    %v1259 = vsel %vm527, %v375, 0.0
    %v1260 = vadd.f32 %v1258, %v1259
    %v1261 = vsel %vm527, %v503, 0.0
    %v1262 = vadd.f32 %v1260, %v1261
    %v1263 = vsel %vm527, %v120, 0.0
    %v1264 = vsel %vm527, %v248, 0.0
    %v1265 = vadd.f32 %v1263, %v1264
    %v1266 = vsel %vm527, %v376, 0.0
    %v1267 = vadd.f32 %v1265, %v1266
    %v1268 = vsel %vm527, %v504, 0.0
    %v1269 = vadd.f32 %v1267, %v1268
    %v1270 = vsel %vm527, %v121, 0.0
    %v1271 = vsel %vm527, %v249, 0.0
    %v1272 = vadd.f32 %v1270, %v1271
    %v1273 = vsel %vm527, %v377, 0.0
    %v1274 = vadd.f32 %v1272, %v1273
    %v1275 = vsel %vm527, %v505, 0.0
    %v1276 = vadd.f32 %v1274, %v1275
    %v1277 = vsel %vm527, %v122, 0.0
    %v1278 = vsel %vm527, %v250, 0.0
    %v1279 = vadd.f32 %v1277, %v1278
    %v1280 = vsel %vm527, %v378, 0.0
    %v1281 = vadd.f32 %v1279, %v1280
    %v1282 = vsel %vm527, %v506, 0.0
    %v1283 = vadd.f32 %v1281, %v1282
    %v1284 = vsel %vm527, %v123, 0.0
    %v1285 = vsel %vm527, %v251, 0.0
    %v1286 = vadd.f32 %v1284, %v1285
    %v1287 = vsel %vm527, %v379, 0.0
    %v1288 = vadd.f32 %v1286, %v1287
    %v1289 = vsel %vm527, %v507, 0.0
    %v1290 = vadd.f32 %v1288, %v1289
    %v1291 = vsel %vm527, %v124, 0.0
    %v1292 = vsel %vm527, %v252, 0.0
    %v1293 = vadd.f32 %v1291, %v1292
    %v1294 = vsel %vm527, %v380, 0.0
    %v1295 = vadd.f32 %v1293, %v1294
    %v1296 = vsel %vm527, %v508, 0.0
    %v1297 = vadd.f32 %v1295, %v1296
    %v1298 = vsel %vm527, %v125, 0.0
    %v1299 = vsel %vm527, %v253, 0.0
    %v1300 = vadd.f32 %v1298, %v1299
    %v1301 = vsel %vm527, %v381, 0.0
    %v1302 = vadd.f32 %v1300, %v1301
    %v1303 = vsel %vm527, %v509, 0.0
    %v1304 = vadd.f32 %v1302, %v1303
    %v1305 = vsel %vm527, %v126, 0.0
    %v1306 = vsel %vm527, %v254, 0.0
    %v1307 = vadd.f32 %v1305, %v1306
    %v1308 = vsel %vm527, %v382, 0.0
    %v1309 = vadd.f32 %v1307, %v1308
    %v1310 = vsel %vm527, %v510, 0.0
    %v1311 = vadd.f32 %v1309, %v1310
    %v1312 = vsel %vm527, %v127, 0.0
    %v1313 = vsel %vm527, %v255, 0.0
    %v1314 = vadd.f32 %v1312, %v1313
    %v1315 = vsel %vm527, %v383, 0.0
    %v1316 = vadd.f32 %v1314, %v1315
    %v1317 = vsel %vm527, %v511, 0.0
    %v1318 = vadd.f32 %v1316, %v1317
    %v1319 = vsel %vm527, %v128, 0.0
    %v1320 = vsel %vm527, %v256, 0.0
    %v1321 = vadd.f32 %v1319, %v1320
    %v1322 = vsel %vm527, %v384, 0.0
    %v1323 = vadd.f32 %v1321, %v1322
    %v1324 = vsel %vm527, %v512, 0.0
    %v1325 = vadd.f32 %v1323, %v1324
    %v1326 = vsel %vm527, %v129, 0.0
    %v1327 = vsel %vm527, %v257, 0.0
    %v1328 = vadd.f32 %v1326, %v1327
    %v1329 = vsel %vm527, %v385, 0.0
    %v1330 = vadd.f32 %v1328, %v1329
    %v1331 = vsel %vm527, %v513, 0.0
    %v1332 = vadd.f32 %v1330, %v1331
    %v1333 = vsel %vm527, %v130, 0.0
    %v1334 = vsel %vm527, %v258, 0.0
    %v1335 = vadd.f32 %v1333, %v1334
    %v1336 = vsel %vm527, %v386, 0.0
    %v1337 = vadd.f32 %v1335, %v1336
    %v1338 = vsel %vm527, %v514, 0.0
    %v1339 = vadd.f32 %v1337, %v1338
    %v1340 = vsel %vm527, %v131, 0.0
    %v1341 = vsel %vm527, %v259, 0.0
    %v1342 = vadd.f32 %v1340, %v1341
    %v1343 = vsel %vm527, %v387, 0.0
    %v1344 = vadd.f32 %v1342, %v1343
    %v1345 = vsel %vm527, %v515, 0.0
    %v1346 = vadd.f32 %v1344, %v1345
    %v1347 = vsel %vm527, %v132, 0.0
    %v1348 = vsel %vm527, %v260, 0.0
    %v1349 = vadd.f32 %v1347, %v1348
    %v1350 = vsel %vm527, %v388, 0.0
    %v1351 = vadd.f32 %v1349, %v1350
    %v1352 = vsel %vm527, %v516, 0.0
    %v1353 = vadd.f32 %v1351, %v1352
    %v1354 = vsel %vm527, %v133, 0.0
    %v1355 = vsel %vm527, %v261, 0.0
    %v1356 = vadd.f32 %v1354, %v1355
    %v1357 = vsel %vm527, %v389, 0.0
    %v1358 = vadd.f32 %v1356, %v1357
    %v1359 = vsel %vm527, %v517, 0.0
    %v1360 = vadd.f32 %v1358, %v1359
    %v1361 = vsel %vm527, %v134, 0.0
    %v1362 = vsel %vm527, %v262, 0.0
    %v1363 = vadd.f32 %v1361, %v1362
    %v1364 = vsel %vm527, %v390, 0.0
    %v1365 = vadd.f32 %v1363, %v1364
    %v1366 = vsel %vm527, %v518, 0.0
    %v1367 = vadd.f32 %v1365, %v1366
    %v1368 = vsel %vm527, %v135, 0.0
    %v1369 = vsel %vm527, %v263, 0.0
    %v1370 = vadd.f32 %v1368, %v1369
    %v1371 = vsel %vm527, %v391, 0.0
    %v1372 = vadd.f32 %v1370, %v1371
    %v1373 = vsel %vm527, %v519, 0.0
    %v1374 = vadd.f32 %v1372, %v1373
    %v1375 = vsel %vm527, %v136, 0.0
    %v1376 = vsel %vm527, %v264, 0.0
    %v1377 = vadd.f32 %v1375, %v1376
    %v1378 = vsel %vm527, %v392, 0.0
    %v1379 = vadd.f32 %v1377, %v1378
    %v1380 = vsel %vm527, %v520, 0.0
    %v1381 = vadd.f32 %v1379, %v1380
    %v1382 = vsel %vm527, %v137, 0.0
    %v1383 = vsel %vm527, %v265, 0.0
    %v1384 = vadd.f32 %v1382, %v1383
    %v1385 = vsel %vm527, %v393, 0.0
    %v1386 = vadd.f32 %v1384, %v1385
    %v1387 = vsel %vm527, %v521, 0.0
    %v1388 = vadd.f32 %v1386, %v1387
    %v1389 = vsel %vm527, %v138, 0.0
    %v1390 = vsel %vm527, %v266, 0.0
    %v1391 = vadd.f32 %v1389, %v1390
    %v1392 = vsel %vm527, %v394, 0.0
    %v1393 = vadd.f32 %v1391, %v1392
    %v1394 = vsel %vm527, %v522, 0.0
    %v1395 = vadd.f32 %v1393, %v1394
    %v1396 = vsel %vm527, %v139, 0.0
    %v1397 = vsel %vm527, %v267, 0.0
    %v1398 = vadd.f32 %v1396, %v1397
    %v1399 = vsel %vm527, %v395, 0.0
    %v1400 = vadd.f32 %v1398, %v1399
    %v1401 = vsel %vm527, %v523, 0.0
    %v1402 = vadd.f32 %v1400, %v1401
    %v1403 = vsel %vm527, %v140, 0.0
    %v1404 = vsel %vm527, %v268, 0.0
    %v1405 = vadd.f32 %v1403, %v1404
    %v1406 = vsel %vm527, %v396, 0.0
    %v1407 = vadd.f32 %v1405, %v1406
    %v1408 = vsel %vm527, %v524, 0.0
    %v1409 = vadd.f32 %v1407, %v1408
    %v1410 = vsel %vm527, %v141, 0.0
    %v1411 = vsel %vm527, %v269, 0.0
    %v1412 = vadd.f32 %v1410, %v1411
    %v1413 = vsel %vm527, %v397, 0.0
    %v1414 = vadd.f32 %v1412, %v1413
    %v1415 = vsel %vm527, %v525, 0.0
    %v1416 = vadd.f32 %v1414, %v1415
    %v1417 = vsel %vm527, %v142, 0.0
    %v1418 = vsel %vm527, %v270, 0.0
    %v1419 = vadd.f32 %v1417, %v1418
    %v1420 = vsel %vm527, %v398, 0.0
    %v1421 = vadd.f32 %v1419, %v1420
    %v1422 = vsel %vm527, %v526, 0.0
    %v1423 = vadd.f32 %v1421, %v1422
    %v1424 = vmul.f32 %v534, 0.25
    %v1425 = vmul.f32 %v541, 0.25
    %v1426 = vmul.f32 %v548, 0.25
    %v1427 = vmul.f32 %v555, 0.25
    %v1428 = vmul.f32 %v562, 0.25
    %v1429 = vmul.f32 %v569, 0.25
    %v1430 = vmul.f32 %v576, 0.25
    %v1431 = vmul.f32 %v583, 0.25
    %v1432 = vmul.f32 %v590, 0.25
    %v1433 = vmul.f32 %v597, 0.25
    %v1434 = vmul.f32 %v604, 0.25
    %v1435 = vmul.f32 %v611, 0.25
    %v1436 = vmul.f32 %v618, 0.25
    %v1437 = vmul.f32 %v625, 0.25
    %v1438 = vmul.f32 %v632, 0.25
    %v1439 = vmul.f32 %v639, 0.25
    %v1440 = vmul.f32 %v646, 0.25
    %v1441 = vmul.f32 %v653, 0.25
    %v1442 = vmul.f32 %v660, 0.25
    %v1443 = vmul.f32 %v667, 0.25
    %v1444 = vmul.f32 %v674, 0.25
    %v1445 = vmul.f32 %v681, 0.25
    %v1446 = vmul.f32 %v688, 0.25
    %v1447 = vmul.f32 %v695, 0.25
    %v1448 = vmul.f32 %v702, 0.25
    %v1449 = vmul.f32 %v709, 0.25
    %v1450 = vmul.f32 %v716, 0.25
    %v1451 = vmul.f32 %v723, 0.25
    %v1452 = vmul.f32 %v730, 0.25
    %v1453 = vmul.f32 %v737, 0.25
    %v1454 = vmul.f32 %v744, 0.25
    %v1455 = vmul.f32 %v751, 0.25
    %v1456 = vmul.f32 %v758, 0.25
    %v1457 = vmul.f32 %v765, 0.25
    %v1458 = vmul.f32 %v772, 0.25
    %v1459 = vmul.f32 %v779, 0.25
    %v1460 = vmul.f32 %v786, 0.25
    %v1461 = vmul.f32 %v793, 0.25
    %v1462 = vmul.f32 %v800, 0.25
    %v1463 = vmul.f32 %v807, 0.25
    %v1464 = vmul.f32 %v814, 0.25
    %v1465 = vmul.f32 %v821, 0.25
    %v1466 = vmul.f32 %v828, 0.25
    %v1467 = vmul.f32 %v835, 0.25
    %v1468 = vmul.f32 %v842, 0.25
    %v1469 = vmul.f32 %v849, 0.25
    %v1470 = vmul.f32 %v856, 0.25
    %v1471 = vmul.f32 %v863, 0.25
    %v1472 = vmul.f32 %v870, 0.25
    %v1473 = vmul.f32 %v877, 0.25
    %v1474 = vmul.f32 %v884, 0.25
    %v1475 = vmul.f32 %v891, 0.25
    %v1476 = vmul.f32 %v898, 0.25
    %v1477 = vmul.f32 %v905, 0.25
    %v1478 = vmul.f32 %v912, 0.25
    %v1479 = vmul.f32 %v919, 0.25
    %v1480 = vmul.f32 %v926, 0.25
    %v1481 = vmul.f32 %v933, 0.25
    %v1482 = vmul.f32 %v940, 0.25
    %v1483 = vmul.f32 %v947, 0.25
    %v1484 = vmul.f32 %v954, 0.25
    %v1485 = vmul.f32 %v961, 0.25
    %v1486 = vmul.f32 %v968, 0.25
    %v1487 = vmul.f32 %v975, 0.25
    %v1488 = vmul.f32 %v982, 0.25
    %v1489 = vmul.f32 %v989, 0.25
    %v1490 = vmul.f32 %v996, 0.25
    %v1491 = vmul.f32 %v1003, 0.25
    %v1492 = vmul.f32 %v1010, 0.25
    %v1493 = vmul.f32 %v1017, 0.25
    %v1494 = vmul.f32 %v1024, 0.25
    %v1495 = vmul.f32 %v1031, 0.25
    %v1496 = vmul.f32 %v1038, 0.25
    %v1497 = vmul.f32 %v1045, 0.25
    %v1498 = vmul.f32 %v1052, 0.25
    %v1499 = vmul.f32 %v1059, 0.25
    %v1500 = vmul.f32 %v1066, 0.25
    %v1501 = vmul.f32 %v1073, 0.25
    %v1502 = vmul.f32 %v1080, 0.25
    %v1503 = vmul.f32 %v1087, 0.25
    %v1504 = vmul.f32 %v1094, 0.25
    %v1505 = vmul.f32 %v1101, 0.25
    %v1506 = vmul.f32 %v1108, 0.25
    %v1507 = vmul.f32 %v1115, 0.25
    %v1508 = vmul.f32 %v1122, 0.25
    %v1509 = vmul.f32 %v1129, 0.25
    %v1510 = vmul.f32 %v1136, 0.25
    %v1511 = vmul.f32 %v1143, 0.25
    %v1512 = vmul.f32 %v1150, 0.25
    %v1513 = vmul.f32 %v1157, 0.25
    %v1514 = vmul.f32 %v1164, 0.25
    %v1515 = vmul.f32 %v1171, 0.25
    %v1516 = vmul.f32 %v1178, 0.25
    %v1517 = vmul.f32 %v1185, 0.25
    %v1518 = vmul.f32 %v1192, 0.25
    %v1519 = vmul.f32 %v1199, 0.25
    %v1520 = vmul.f32 %v1206, 0.25
    %v1521 = vmul.f32 %v1213, 0.25
    %v1522 = vmul.f32 %v1220, 0.25
    %v1523 = vmul.f32 %v1227, 0.25
    %v1524 = vmul.f32 %v1234, 0.25
    %v1525 = vmul.f32 %v1241, 0.25
    %v1526 = vmul.f32 %v1248, 0.25
    %v1527 = vmul.f32 %v1255, 0.25
    %v1528 = vmul.f32 %v1262, 0.25
    %v1529 = vmul.f32 %v1269, 0.25
    %v1530 = vmul.f32 %v1276, 0.25
    %v1531 = vmul.f32 %v1283, 0.25
    %v1532 = vmul.f32 %v1290, 0.25
    %v1533 = vmul.f32 %v1297, 0.25
    %v1534 = vmul.f32 %v1304, 0.25
    %v1535 = vmul.f32 %v1311, 0.25
    %v1536 = vmul.f32 %v1318, 0.25
    %v1537 = vmul.f32 %v1325, 0.25
    %v1538 = vmul.f32 %v1332, 0.25
    %v1539 = vmul.f32 %v1339, 0.25
    %v1540 = vmul.f32 %v1346, 0.25
    %v1541 = vmul.f32 %v1353, 0.25
    %v1542 = vmul.f32 %v1360, 0.25
    %v1543 = vmul.f32 %v1367, 0.25
    %v1544 = vmul.f32 %v1374, 0.25
    %v1545 = vmul.f32 %v1381, 0.25
    %v1546 = vmul.f32 %v1388, 0.25
    %v1547 = vmul.f32 %v1395, 0.25
    %v1548 = vmul.f32 %v1402, 0.25
    %v1549 = vmul.f32 %v1409, 0.25
    %v1550 = vmul.f32 %v1416, 0.25
    %v1551 = vmul.f32 %v1423, 0.25
    %v1552 = vld [vmem:[%s0] sm:$0xff]
    %v1553 = vld [vmem:[%s0 + $0x8] sm:$0xff]
    %1556 = vst [vmem:[#allocation1] ss:$4 sm:$0xff] %v1552
    %s1557 = scalar_lea.vmem [#allocation1], 32
    %1558 = vst [vmem:[%s1557] ss:$4 sm:$0xff] %v1553
    %v1559 = vld.sshfl [vmem:[#allocation1] sm:$0xff pattern:$0x73625140]
    %v1560 = vld.sshfl [vmem:[#allocation1 + $0x8] sm:$0xff pattern:$0x73625140]
    %v1561 = vld.sshfl [vmem:[#allocation1 + $0x10] sm:$0xff pattern:$0x73625140]
    %v1562 = vld.sshfl [vmem:[#allocation1 + $0x18] sm:$0xff pattern:$0x73625140]
    %v1563 = vld.sshfl [vmem:[#allocation1 + $0x20] sm:$0xff pattern:$0x73625140]
    %v1564 = vld.sshfl [vmem:[#allocation1 + $0x28] sm:$0xff pattern:$0x73625140]
    %v1565 = vld.sshfl [vmem:[#allocation1 + $0x30] sm:$0xff pattern:$0x73625140]
    %v1566 = vld.sshfl [vmem:[#allocation1 + $0x38] sm:$0xff pattern:$0x73625140]
    %1575 = vmatpush.msra.mxu0 %v1439
    %1576 = vmatpush.msra.mxu0 %v1438
    %1577 = vmatpush.msra.mxu0 %v1437
    %1578 = vmatpush.msra.mxu0 %v1436
    %1579 = vmatpush.msra.mxu0 %v1435
    %1580 = vmatpush.msra.mxu0 %v1434
    %1581 = vmatpush.msra.mxu0 %v1433
    %1582 = vmatpush.msra.mxu0 %v1432
    %1583 = vmatpush.msra.mxu0 %v1431
    %1584 = vmatpush.msra.mxu0 %v1430
    %1585 = vmatpush.msra.mxu0 %v1429
    %1586 = vmatpush.msra.mxu0 %v1428
    %1587 = vmatpush.msra.mxu0 %v1427
    %1588 = vmatpush.msra.mxu0 %v1426
    %1589 = vmatpush.msra.mxu0 %v1425
    %1590 = vmatpush.msra.mxu0 %v1424
    %1591 = vmatmul.f32.gmra.mxu0 %v1559
    %v1592 = vpop.f32.mrf.mxu0
    %v1593 = vadd.f32 0.0, %v1592
    %1594 = vdwg.mxu0
    %1595 = vmatpush.msra.mxu0 %v1455
    %1596 = vmatpush.msra.mxu0 %v1454
    %1597 = vmatpush.msra.mxu0 %v1453
    %1598 = vmatpush.msra.mxu0 %v1452
    %1599 = vmatpush.msra.mxu0 %v1451
    %1600 = vmatpush.msra.mxu0 %v1450
    %1601 = vmatpush.msra.mxu0 %v1449
    %1602 = vmatpush.msra.mxu0 %v1448
    %1603 = vmatpush.msra.mxu0 %v1447
    %1604 = vmatpush.msra.mxu0 %v1446
    %1605 = vmatpush.msra.mxu0 %v1445
    %1606 = vmatpush.msra.mxu0 %v1444
    %1607 = vmatpush.msra.mxu0 %v1443
    %1608 = vmatpush.msra.mxu0 %v1442
    %1609 = vmatpush.msra.mxu0 %v1441
    %1610 = vmatpush.msra.mxu0 %v1440
    %1611 = vmatmul.f32.gmra.mxu0 %v1560
    %v1612 = vpop.f32.mrf.mxu0
    %v1613 = vadd.f32 %v1593, %v1612
    %1614 = vdwg.mxu0
    %1615 = vmatpush.msra.mxu0 %v1471
    %1616 = vmatpush.msra.mxu0 %v1470
    %1617 = vmatpush.msra.mxu0 %v1469
    %1618 = vmatpush.msra.mxu0 %v1468
    %1619 = vmatpush.msra.mxu0 %v1467
    %1620 = vmatpush.msra.mxu0 %v1466
    %1621 = vmatpush.msra.mxu0 %v1465
    %1622 = vmatpush.msra.mxu0 %v1464
    %1623 = vmatpush.msra.mxu0 %v1463
    %1624 = vmatpush.msra.mxu0 %v1462
    %1625 = vmatpush.msra.mxu0 %v1461
    %1626 = vmatpush.msra.mxu0 %v1460
    %1627 = vmatpush.msra.mxu0 %v1459
    %1628 = vmatpush.msra.mxu0 %v1458
    %1629 = vmatpush.msra.mxu0 %v1457
    %1630 = vmatpush.msra.mxu0 %v1456
    %1631 = vmatmul.f32.gmra.mxu0 %v1561
    %v1632 = vpop.f32.mrf.mxu0
    %v1633 = vadd.f32 %v1613, %v1632
    %1634 = vdwg.mxu0
    %1635 = vmatpush.msra.mxu0 %v1487
    %1636 = vmatpush.msra.mxu0 %v1486
    %1637 = vmatpush.msra.mxu0 %v1485
    %1638 = vmatpush.msra.mxu0 %v1484
    %1639 = vmatpush.msra.mxu0 %v1483
    %1640 = vmatpush.msra.mxu0 %v1482
    %1641 = vmatpush.msra.mxu0 %v1481
    %1642 = vmatpush.msra.mxu0 %v1480
    %1643 = vmatpush.msra.mxu0 %v1479
    %1644 = vmatpush.msra.mxu0 %v1478
    %1645 = vmatpush.msra.mxu0 %v1477
    %1646 = vmatpush.msra.mxu0 %v1476
    %1647 = vmatpush.msra.mxu0 %v1475
    %1648 = vmatpush.msra.mxu0 %v1474
    %1649 = vmatpush.msra.mxu0 %v1473
    %1650 = vmatpush.msra.mxu0 %v1472
    %1651 = vmatmul.f32.gmra.mxu0 %v1562
    %v1652 = vpop.f32.mrf.mxu0
    %v1653 = vadd.f32 %v1633, %v1652
    %1654 = vdwg.mxu0
    %1655 = vmatpush.msra.mxu0 %v1503
    %1656 = vmatpush.msra.mxu0 %v1502
    %1657 = vmatpush.msra.mxu0 %v1501
    %1658 = vmatpush.msra.mxu0 %v1500
    %1659 = vmatpush.msra.mxu0 %v1499
    %1660 = vmatpush.msra.mxu0 %v1498
    %1661 = vmatpush.msra.mxu0 %v1497
    %1662 = vmatpush.msra.mxu0 %v1496
    %1663 = vmatpush.msra.mxu0 %v1495
    %1664 = vmatpush.msra.mxu0 %v1494
    %1665 = vmatpush.msra.mxu0 %v1493
    %1666 = vmatpush.msra.mxu0 %v1492
    %1667 = vmatpush.msra.mxu0 %v1491
    %1668 = vmatpush.msra.mxu0 %v1490
    %1669 = vmatpush.msra.mxu0 %v1489
    %1670 = vmatpush.msra.mxu0 %v1488
    %1671 = vmatmul.f32.gmra.mxu0 %v1563
    %v1672 = vpop.f32.mrf.mxu0
    %v1673 = vadd.f32 %v1653, %v1672
    %1674 = vdwg.mxu0
    %1675 = vmatpush.msra.mxu0 %v1519
    %1676 = vmatpush.msra.mxu0 %v1518
    %1677 = vmatpush.msra.mxu0 %v1517
    %1678 = vmatpush.msra.mxu0 %v1516
    %1679 = vmatpush.msra.mxu0 %v1515
    %1680 = vmatpush.msra.mxu0 %v1514
    %1681 = vmatpush.msra.mxu0 %v1513
    %1682 = vmatpush.msra.mxu0 %v1512
    %1683 = vmatpush.msra.mxu0 %v1511
    %1684 = vmatpush.msra.mxu0 %v1510
    %1685 = vmatpush.msra.mxu0 %v1509
    %1686 = vmatpush.msra.mxu0 %v1508
    %1687 = vmatpush.msra.mxu0 %v1507
    %1688 = vmatpush.msra.mxu0 %v1506
    %1689 = vmatpush.msra.mxu0 %v1505
    %1690 = vmatpush.msra.mxu0 %v1504
    %1691 = vmatmul.f32.gmra.mxu0 %v1564
    %v1692 = vpop.f32.mrf.mxu0
    %v1693 = vadd.f32 %v1673, %v1692
    %1694 = vdwg.mxu0
    %1695 = vmatpush.msra.mxu0 %v1535
    %1696 = vmatpush.msra.mxu0 %v1534
    %1697 = vmatpush.msra.mxu0 %v1533
    %1698 = vmatpush.msra.mxu0 %v1532
    %1699 = vmatpush.msra.mxu0 %v1531
    %1700 = vmatpush.msra.mxu0 %v1530
    %1701 = vmatpush.msra.mxu0 %v1529
    %1702 = vmatpush.msra.mxu0 %v1528
    %1703 = vmatpush.msra.mxu0 %v1527
    %1704 = vmatpush.msra.mxu0 %v1526
    %1705 = vmatpush.msra.mxu0 %v1525
    %1706 = vmatpush.msra.mxu0 %v1524
    %1707 = vmatpush.msra.mxu0 %v1523
    %1708 = vmatpush.msra.mxu0 %v1522
    %1709 = vmatpush.msra.mxu0 %v1521
    %1710 = vmatpush.msra.mxu0 %v1520
    %1711 = vmatmul.f32.gmra.mxu0 %v1565
    %v1712 = vpop.f32.mrf.mxu0
    %v1713 = vadd.f32 %v1693, %v1712
    %1714 = vdwg.mxu0
    %1715 = vmatpush.msra.mxu0 %v1551
    %1716 = vmatpush.msra.mxu0 %v1550
    %1717 = vmatpush.msra.mxu0 %v1549
    %1718 = vmatpush.msra.mxu0 %v1548
    %1719 = vmatpush.msra.mxu0 %v1547
    %1720 = vmatpush.msra.mxu0 %v1546
    %1721 = vmatpush.msra.mxu0 %v1545
    %1722 = vmatpush.msra.mxu0 %v1544
    %1723 = vmatpush.msra.mxu0 %v1543
    %1724 = vmatpush.msra.mxu0 %v1542
    %1725 = vmatpush.msra.mxu0 %v1541
    %1726 = vmatpush.msra.mxu0 %v1540
    %1727 = vmatpush.msra.mxu0 %v1539
    %1728 = vmatpush.msra.mxu0 %v1538
    %1729 = vmatpush.msra.mxu0 %v1537
    %1730 = vmatpush.msra.mxu0 %v1536
    %1731 = vmatmul.f32.gmra.mxu0 %v1566
    %v1732 = vpop.f32.mrf.mxu0
    %v1733 = vadd.f32 %v1713, %v1732
    %1734 = vdwg.mxu0
    %p1735 = scmp.eq.s32.totalorder 0, 0
    // Predicated region
    $region14: #{tpu_custom_call.1} parent=1 // pred_check
      %p1736 = pneg %p1735
    $region15: #{tpu_custom_call.1} parent=1 // pred_check_branch
      %1738 = sbr.rel (%p1736) target = $region17
    $region16: #{tpu_custom_call.1} parent=1 // pred_region
      %vm1739 = vcmask 123904
      %1740 = vst.msk [vmem:[#allocation2] sm:$0x3] %vm1739, %v1733
    $region17: #{tpu_custom_call.1} parent=1 // pred_fallthru
      _
    %p1741 = scmp.ne.s32.totalorder 0, 0
    // Predicated region
    $region18: #{tpu_custom_call.1} parent=1 // pred_check
      %p1742 = pneg %p1741
    $region19: #{tpu_custom_call.1} parent=1 // pred_check_branch
      %1744 = sbr.rel (%p1742) target = $region21
    $region20: #{tpu_custom_call.1} parent=1 // pred_region
      %v1745 = vld [vmem:[#allocation2] sm:$0x3]
      %v1746 = vadd.f32 %v1745, %v1733
      %vm1747 = vcmask 123904
      %1748 = vst.msk [vmem:[#allocation2] sm:$0x3] %vm1747, %v1746
    $region21: #{tpu_custom_call.1} parent=1 // pred_fallthru
      _
    // Predicated region
    $region22: #{tpu_custom_call.1} parent=1 // pred_check
      %p1749 = pneg %p1735
    $region23: #{tpu_custom_call.1} parent=1 // pred_check_branch
      %1751 = sbr.rel (%p1749) target = $region25
    $region24: #{tpu_custom_call.1} parent=1 // pred_region
      %v1752 = vld [vmem:[%s2] sm:$0xf]
      %vm1753 = vcmask 125952
      %v1754 = vsel %vm1753, %v1752, 0.0
      %v1755 = vrot.slane %v1754, 4
      %v1756 = vadd.f32 %v1754, %v1755
      %v1757 = vrot.slane %v1756, 2
      %v1758 = vadd.f32 %v1756, %v1757
      %v1759 = vrot.slane %v1758, 1
      %v1760 = vadd.f32 %v1758, %v1759
      %v1761 = vmul.f32 %v1760, 0.25
      %v1762 = vld [vmem:[#allocation2] sm:$0x3]
      %v1763 = vadd.f32 %v1762, %v1761
      %vm1764 = vcmask 123904
      %1765 = vst.msk [vmem:[#allocation2] sm:$0x3] %vm1764, %v1763
    $region25: #{tpu_custom_call.1} parent=1 // pred_fallthru
      _
    // Predicated region
    $region26: #{tpu_custom_call.1} parent=1 // pred_check
      _
    $region27: #{tpu_custom_call.1} parent=1 // pred_check_branch
      %1767 = sbr.rel (0) target = $region29
    $region28: #{tpu_custom_call.1} parent=1 // pred_region
      %1769 = vsyncadd [#allocation3], 0
      %s1771 = sshll.u32 [#allocation2], 4
      %s1772 = int_to_ptr.vmem [resolvable:$true] %s1771
      %s1773 = sshll.u32 %s3, 4
      %s1774 = int_to_ptr.hbm [resolvable:$true] %s1773
      %1776 = dma.vmem_to_hbm [thread:$0]  %s1772, 32, %s1774, [#allocation3]
    $region29: #{tpu_custom_call.1} parent=1 // pred_fallthru
      _
    // Predicated region
    $region30: #{tpu_custom_call.1} parent=1 // pred_check
      _
    $region31: #{tpu_custom_call.1} parent=1 // pred_check_branch
      %1778 = sbr.rel (0) target = $region33
    $region32: #{tpu_custom_call.1} parent=1 // pred_region
      %1780 = dma.done [#allocation3], 32
    $region33: #{tpu_custom_call.1} parent=1 // pred_fallthru
      _
    %1781 = vsyncpa [#allocation3], 1

</llo_original>
